<compile_context>
chip_gen: v7x
topology: tpu7x:2x2x1
jax: 0.10.0
libtpu: 0.0.40
codegen_flags: <defaults>
</compile_context>

<pallas_src>
import functools

import jax
import jax.numpy as jnp
from jax import lax
from jax.experimental import pallas as pl
from jax.experimental.pallas import tpu as pltpu

LN_EPS = 1e-5  # torch.nn.LayerNorm default eps


def _erf(x):
    # Abramowitz & Stegun 7.1.26 (|err| < 1.5e-7).  exp() lands on the EUP;
    # the short polynomial is cheap VALU filler next to the MXU matmuls.
    a1, a2, a3, a4, a5 = 0.254829592, -0.284496736, 1.421413741, -1.453152027, 1.061405429
    p = 0.3275911
    sgn = jnp.where(x >= 0.0, 1.0, -1.0)
    ax = jnp.abs(x)
    t = 1.0 / (1.0 + p * ax)
    poly = ((((a5 * t + a4) * t + a3) * t + a2) * t + a1) * t
    return sgn * (1.0 - poly * jnp.exp(-ax * ax))


def _gelu_exact(x):
    # torch.nn.GELU() default: 0.5 * x * (1 + erf(x / sqrt(2)))
    return 0.5 * x * (1.0 + _erf(x * 0.7071067811865476))


def _residual_block_kernel(
    x_ref,                     # (1, C, HW)         VMEM, lane-dense input
    bmat_ref,                  # (HW, HW)           VMEM, LN group-averaging matrix
    mask_ref,                  # (K*K, HW)          VMEM, conv border masks (0/1)
    g1_ref, b1_ref,            # (1, HW)            VMEM, LayerNorm-1 affine (tiled)
    w1_ref, c1_ref,            # (C, K*K*C), (C,1)  VMEM, Conv-1 weight / bias
    g2_ref, b2_ref,            # (1, HW)            VMEM, LayerNorm-2 affine (tiled)
    w2_ref, c2_ref,            # (C, K*K*C), (C,1)  VMEM, Conv-2 weight / bias
    o_ref,                     # (1, C, HW)         VMEM, lane-dense output
    patch_ref,                 # (K*K*C, HW)        VMEM scratch: im2col patches
    *, C, H, W, K,
):
    P = K // 2
    HW = H * W
    x = x_ref[0].astype(jnp.float32)          # (C, HW)
    bmat = bmat_ref[...]                      # (HW, HW)

    def layer(y, g_ref, b_ref, w_ref, c_ref):
        # ---- LayerNorm over n_feats (each group = W consecutive lanes) ----
        # y @ B broadcasts each (c, t)-row's feature mean back over its W lanes.
        mean = jnp.dot(y, bmat, preferred_element_type=jnp.float32)
        cent = y - mean
        var = jnp.dot(cent * cent, bmat, preferred_element_type=jnp.float32)
        y = cent * lax.rsqrt(var + LN_EPS)
        y = y * g_ref[...] + b_ref[...]
        # ---- exact (erf-based) GELU ----
        y = _gelu_exact(y)
        # ---- Conv2d 'same', stride 1, as ONE MXU matmul over im2col patches --
        # patch[(kh*K + kw)*C + ci, i*W + j] = y_zeropad[ci, i + kh - P, j + kw - P]
        # A flattened (row-major) shift of s = dh*W + dw lanes produces exactly
        # that tap; the precomputed mask zeroes the out-of-image positions that
        # the cyclic roll pulls from the wrong row.
        for kh in range(K):
            for kw in range(K):
                idx = kh * K + kw
                s = (kh - P) * W + (kw - P)
                shifted = y if s == 0 else pltpu.roll(y, shift=(-s) % HW, axis=1)
                patch_ref[pl.ds(idx * C, C), :] = shifted * mask_ref[pl.ds(idx, 1), :]
        return jnp.dot(w_ref[...], patch_ref[...],
                       preferred_element_type=jnp.float32) + c_ref[...]

    y = layer(x, g1_ref, b1_ref, w1_ref, c1_ref)
    # TODO(synk): nn.Dropout is identity in eval mode; no stochastic dropout applied.
    y = layer(y, g2_ref, b2_ref, w2_ref, c2_ref)

    o_ref[0] = (x + y).astype(o_ref.dtype)    # lane-dense (C, HW) store


def residual_block(x, params, kernel_size):
    """x: (N, C, T, n_feats) float32.  params: dict of the two sub-layers."""
    N, C, H, W = x.shape
    K = kernel_size
    P = K // 2
    HW = H * W
    f32 = jnp.float32

    # Lane-dense view of input/output: last memory dim is H*W.
    x2d = x.reshape(N, C, HW)

    # LayerNorm group-averaging matrix: block-diagonal (HW, HW) with 1/W in
    # every (W x W) diagonal block.
    A = jnp.repeat(jnp.eye(H, dtype=f32), W, axis=0)            # (HW, H)
    bmat = (A @ A.T) / jnp.asarray(W, f32)                      # (HW, HW)

    # Conv border masks: tap (kh, kw) is valid at output pixel (i, j) iff the
    # source pixel (i + kh - P, j + kw - P) lies inside the image.
    rows = jnp.arange(HW, dtype=jnp.int32) // W
    cols = jnp.arange(HW, dtype=jnp.int32) % W
    masks = []
    for kh in range(K):
        for kw in range(K):
            dh, dw = kh - P, kw - P
            ok = ((rows + dh >= 0) & (rows + dh < H) &
                  (cols + dw >= 0) & (cols + dw < W))
            masks.append(ok.astype(f32))
    masks = jnp.stack(masks, axis=0)                            # (K*K, HW)

    def prep_layer(g, b, w, bias):
        g_full = jnp.tile(g.astype(f32), H).reshape(1, HW)      # gamma[p % W]
        b_full = jnp.tile(b.astype(f32), H).reshape(1, HW)
        # Weight rows must match the patch-row order (kh*K + kw)*C + ci.
        w2d = jnp.transpose(w.astype(f32), (0, 2, 3, 1)).reshape(C, K * K * C)
        return g_full, b_full, w2d, bias.astype(f32).reshape(C, 1)

    g1, b1, w1, c1 = prep_layer(params["g1"], params["b1"], params["w1"], params["bb1"])
    g2, b2, w2, c2 = prep_layer(params["g2"], params["b2"], params["w2"], params["bb2"])

    kern = functools.partial(_residual_block_kernel, C=C, H=H, W=W, K=K)

    xio_spec = pl.BlockSpec((1, C, HW), lambda n: (n, 0, 0))

    def const_spec(shape):
        return pl.BlockSpec(shape, lambda n, _s=shape: (0,) * len(_s))

    out2d = pl.pallas_call(
        kern,
        out_shape=jax.ShapeDtypeStruct((N, C, HW), x.dtype),
        grid_spec=pltpu.PrefetchScalarGridSpec(
            num_scalar_prefetch=0,
            grid=(N,),
            in_specs=[
                xio_spec,
                const_spec((HW, HW)),
                const_spec((K * K, HW)),
                const_spec((1, HW)), const_spec((1, HW)),
                const_spec((C, K * K * C)), const_spec((C, 1)),
                const_spec((1, HW)), const_spec((1, HW)),
                const_spec((C, K * K * C)), const_spec((C, 1)),
            ],
            out_specs=xio_spec,
            scratch_shapes=[pltpu.VMEM((K * K * C, HW), jnp.float32)],
        ),
        compiler_params=pltpu.CompilerParams(
            dimension_semantics=("parallel",),      # v7x: split batch over 2 TCs
            vmem_limit_bytes=32 * 1024 * 1024,
        ),
    )(x2d, bmat, masks, g1, b1, w1, c1, g2, b2, w2, c2)

    return out2d.reshape(N, C, H, W)


def residual_block_reference(x, params, kernel_size):
    """Pure-JAX reference mirroring the PyTorch forward (eval mode)."""
    K = kernel_size
    y = x
    for (g, b, w, bb) in [
        (params["g1"], params["b1"], params["w1"], params["bb1"]),
        (params["g2"], params["b2"], params["w2"], params["bb2"]),
    ]:
        mean = y.mean(-1, keepdims=True)
        var = ((y - mean) ** 2).mean(-1, keepdims=True)
        y = (y - mean) / jnp.sqrt(var + LN_EPS) * g + b
        y = jax.nn.gelu(y, approximate=False)
        y = lax.conv_general_dilated(
            y, w, window_strides=(1, 1), padding=[(K // 2, K // 2)] * 2,
            dimension_numbers=("NCHW", "OIHW", "NCHW"),
            precision=lax.Precision.HIGHEST,
        )
        y = y + bb.reshape(1, -1, 1, 1)
    return x + y


if __name__ == "__main__":
    # Small shapes consistent with the module: in_channels == out_channels,
    # stride == 1, kernel == 3, n_feats == 16, time == 16, batch == 2.
    N, C, H, W, K = 2, 4, 16, 16, 3

    key = jax.random.PRNGKey(0)
    ks = jax.random.split(key, 9)
    x = jax.random.normal(ks[0], (N, C, H, W), jnp.float32)

    bound = 1.0 / jnp.sqrt(jnp.float32(C * K * K))
    params = {
        # LayerNorm 1 (perturbed away from 1/0 so the affine path is exercised)
        "g1": 1.0 + 0.1 * jax.random.normal(ks[1], (W,), jnp.float32),
        "b1": 0.1 * jax.random.normal(ks[2], (W,), jnp.float32),
        # Conv 1
        "w1": jax.random.uniform(ks[3], (C, C, K, K), jnp.float32, -bound, bound),
        "bb1": jax.random.uniform(ks[4], (C,), jnp.float32, -bound, bound),
        # LayerNorm 2
        "g2": 1.0 + 0.1 * jax.random.normal(ks[5], (W,), jnp.float32),
        "b2": 0.1 * jax.random.normal(ks[6], (W,), jnp.float32),
        # Conv 2
        "w2": jax.random.uniform(ks[7], (C, C, K, K), jnp.float32, -bound, bound),
        "bb2": jax.random.uniform(ks[8], (C,), jnp.float32, -bound, bound),
    }

    out = residual_block(x, params, K)
    out = jax.block_until_ready(out)

    ref = jax.block_until_ready(residual_block_reference(x, params, K))
    assert out.shape == (N, C, H, W)
    assert jnp.allclose(out, ref, atol=1e-3, rtol=1e-3), (
        float(jnp.max(jnp.abs(out - ref))))

    print("KERNEL_OK")
</pallas_src>

<mosaic_0001>
module attributes {stable_mosaic.version = 11 : i64} {
  func.func @_residual_block_kernel(%arg0: i32, %arg1: memref<1x4x256xf32, #tpu.memory_space<vmem>>, %arg2: memref<256x256xf32, #tpu.memory_space<vmem>>, %arg3: memref<9x256xf32, #tpu.memory_space<vmem>>, %arg4: memref<1x256xf32, #tpu.memory_space<vmem>>, %arg5: memref<1x256xf32, #tpu.memory_space<vmem>>, %arg6: memref<4x36xf32, #tpu.memory_space<vmem>>, %arg7: memref<4x1xf32, #tpu.memory_space<vmem>>, %arg8: memref<1x256xf32, #tpu.memory_space<vmem>>, %arg9: memref<1x256xf32, #tpu.memory_space<vmem>>, %arg10: memref<4x36xf32, #tpu.memory_space<vmem>>, %arg11: memref<4x1xf32, #tpu.memory_space<vmem>>, %arg12: memref<1x4x256xf32, #tpu.memory_space<vmem>>, %arg13: memref<36x256xf32, #tpu.memory_space<vmem>>) attributes {dimension_semantics = [#tpu.dimension_semantics<parallel>], iteration_bounds = array<i64: 2>, scalar_prefetch = 0 : i64, scratch_operands = 1 : i64, tpu.core_type = #tpu.core_type<tc>, window_params = [{transform_indices = @transform_0, window_bounds = array<i64: 1, 4, 256>}, {pipeline_mode = #tpu.pipeline_mode<synchronous>, transform_indices = @transform_1, window_bounds = array<i64: 256, 256>}, {pipeline_mode = #tpu.pipeline_mode<synchronous>, transform_indices = @transform_2, window_bounds = array<i64: 9, 256>}, {pipeline_mode = #tpu.pipeline_mode<synchronous>, transform_indices = @transform_3, window_bounds = array<i64: 1, 256>}, {pipeline_mode = #tpu.pipeline_mode<synchronous>, transform_indices = @transform_4, window_bounds = array<i64: 1, 256>}, {pipeline_mode = #tpu.pipeline_mode<synchronous>, transform_indices = @transform_5, window_bounds = array<i64: 4, 36>}, {pipeline_mode = #tpu.pipeline_mode<synchronous>, transform_indices = @transform_6, window_bounds = array<i64: 4, 1>}, {pipeline_mode = #tpu.pipeline_mode<synchronous>, transform_indices = @transform_7, window_bounds = array<i64: 1, 256>}, {pipeline_mode = #tpu.pipeline_mode<synchronous>, transform_indices = @transform_8, window_bounds = array<i64: 1, 256>}, {pipeline_mode = #tpu.pipeline_mode<synchronous>, transform_indices = @transform_9, window_bounds = array<i64: 4, 36>}, {pipeline_mode = #tpu.pipeline_mode<synchronous>, transform_indices = @transform_10, window_bounds = array<i64: 4, 1>}, {transform_indices = @transform_11, window_bounds = array<i64: 1, 4, 256>}]} {
    %c0 = arith.constant 0 : index
    %c0_0 = arith.constant 0 : index
    %c0_1 = arith.constant 0 : index
    %0 = vector.load %arg1[%c0, %c0_0, %c0_1] : memref<1x4x256xf32, #tpu.memory_space<vmem>>, vector<1x4x256xf32>
    %1 = vector.shape_cast %0 : vector<1x4x256xf32> to vector<4x256xf32>
    %c0_2 = arith.constant 0 : index
    %c0_3 = arith.constant 0 : index
    %2 = vector.load %arg2[%c0_2, %c0_3] : memref<256x256xf32, #tpu.memory_space<vmem>>, vector<256x256xf32>
    %cst = arith.constant dense<0.000000e+00> : vector<4x256xf32>
    %3 = tpu.matmul %1, %2, %cst {dimension_numbers = #tpu.dot_dimension_numbers<[1], [0], [0], [1], [0, 0, 1, 1], [], []>} : vector<4x256xf32>, vector<256x256xf32>, vector<4x256xf32> -> vector<4x256xf32>
    %4 = arith.subf %1, %3 : vector<4x256xf32>
    %5 = arith.mulf %4, %4 : vector<4x256xf32>
    %cst_4 = arith.constant dense<0.000000e+00> : vector<4x256xf32>
    %6 = tpu.matmul %5, %2, %cst_4 {dimension_numbers = #tpu.dot_dimension_numbers<[1], [0], [0], [1], [0, 0, 1, 1], [], []>} : vector<4x256xf32>, vector<256x256xf32>, vector<4x256xf32> -> vector<4x256xf32>
    %cst_5 = arith.constant 9.99999974E-6 : f32
    %7 = vector.broadcast %cst_5 : f32 to vector<4x256xf32>
    %8 = arith.addf %6, %7 : vector<4x256xf32>
    %9 = math.rsqrt %8 : vector<4x256xf32>
    %10 = arith.mulf %4, %9 : vector<4x256xf32>
    %c0_6 = arith.constant 0 : index
    %c0_7 = arith.constant 0 : index
    %11 = vector.load %arg4[%c0_6, %c0_7] : memref<1x256xf32, #tpu.memory_space<vmem>>, vector<1x256xf32>
    %12 = vector.broadcast %11 : vector<1x256xf32> to vector<4x256xf32>
    %13 = arith.mulf %10, %12 : vector<4x256xf32>
    %c0_8 = arith.constant 0 : index
    %c0_9 = arith.constant 0 : index
    %14 = vector.load %arg5[%c0_8, %c0_9] : memref<1x256xf32, #tpu.memory_space<vmem>>, vector<1x256xf32>
    %15 = vector.broadcast %14 : vector<1x256xf32> to vector<4x256xf32>
    %16 = arith.addf %13, %15 : vector<4x256xf32>
    %cst_10 = arith.constant 5.000000e-01 : f32
    %17 = vector.broadcast %cst_10 : f32 to vector<4x256xf32>
    %18 = arith.mulf %17, %16 : vector<4x256xf32>
    %cst_11 = arith.constant 0.707106769 : f32
    %19 = vector.broadcast %cst_11 : f32 to vector<4x256xf32>
    %20 = arith.mulf %16, %19 : vector<4x256xf32>
    %cst_12 = arith.constant 0.000000e+00 : f32
    %21 = vector.broadcast %cst_12 : f32 to vector<4x256xf32>
    %22 = arith.cmpf oge, %20, %21 : vector<4x256xf32>
    %cst_13 = arith.constant 1.000000e+00 : f32
    %cst_14 = arith.constant -1.000000e+00 : f32
    %23 = vector.broadcast %cst_13 : f32 to vector<4x256xf32>
    %24 = vector.broadcast %cst_14 : f32 to vector<4x256xf32>
    %25 = arith.select %22, %23, %24 : vector<4x256xi1>, vector<4x256xf32>
    %26 = math.absf %20 : vector<4x256xf32>
    %cst_15 = arith.constant 0.327591091 : f32
    %27 = vector.broadcast %cst_15 : f32 to vector<4x256xf32>
    %28 = arith.mulf %27, %26 : vector<4x256xf32>
    %cst_16 = arith.constant 1.000000e+00 : f32
    %29 = vector.broadcast %cst_16 : f32 to vector<4x256xf32>
    %30 = arith.addf %29, %28 : vector<4x256xf32>
    %cst_17 = arith.constant 1.000000e+00 : f32
    %31 = vector.broadcast %cst_17 : f32 to vector<4x256xf32>
    %32 = arith.divf %31, %30 : vector<4x256xf32>
    %cst_18 = arith.constant 1.06140542 : f32
    %33 = vector.broadcast %cst_18 : f32 to vector<4x256xf32>
    %34 = arith.mulf %33, %32 : vector<4x256xf32>
    %cst_19 = arith.constant -1.45315206 : f32
    %35 = vector.broadcast %cst_19 : f32 to vector<4x256xf32>
    %36 = arith.addf %34, %35 : vector<4x256xf32>
    %37 = arith.mulf %36, %32 : vector<4x256xf32>
    %cst_20 = arith.constant 1.42141378 : f32
    %38 = vector.broadcast %cst_20 : f32 to vector<4x256xf32>
    %39 = arith.addf %37, %38 : vector<4x256xf32>
    %40 = arith.mulf %39, %32 : vector<4x256xf32>
    %cst_21 = arith.constant -0.284496725 : f32
    %41 = vector.broadcast %cst_21 : f32 to vector<4x256xf32>
    %42 = arith.addf %40, %41 : vector<4x256xf32>
    %43 = arith.mulf %42, %32 : vector<4x256xf32>
    %cst_22 = arith.constant 0.254829586 : f32
    %44 = vector.broadcast %cst_22 : f32 to vector<4x256xf32>
    %45 = arith.addf %43, %44 : vector<4x256xf32>
    %46 = arith.mulf %45, %32 : vector<4x256xf32>
    %cst_23 = arith.constant 0.000000e+00 : f32
    %47 = vector.broadcast %cst_23 : f32 to vector<4x256xf32>
    %48 = arith.subf %47, %26 : vector<4x256xf32>
    %49 = arith.mulf %48, %26 : vector<4x256xf32>
    %50 = math.exp %49 : vector<4x256xf32>
    %51 = arith.mulf %46, %50 : vector<4x256xf32>
    %cst_24 = arith.constant 1.000000e+00 : f32
    %52 = vector.broadcast %cst_24 : f32 to vector<4x256xf32>
    %53 = arith.subf %52, %51 : vector<4x256xf32>
    %54 = arith.mulf %25, %53 : vector<4x256xf32>
    %cst_25 = arith.constant 1.000000e+00 : f32
    %55 = vector.broadcast %cst_25 : f32 to vector<4x256xf32>
    %56 = arith.addf %55, %54 : vector<4x256xf32>
    %57 = arith.mulf %18, %56 : vector<4x256xf32>
    %c17_i32 = arith.constant 17 : i32
    %58 = tpu.dynamic_rotate %57 by %c17_i32 dim 1 : vector<4x256xf32>, i32 -> vector<4x256xf32>
    %c0_26 = arith.constant 0 : index
    %c0_27 = arith.constant 0 : index
    %59 = vector.load %arg3[%c0_26, %c0_27] : memref<9x256xf32, #tpu.memory_space<vmem>>, vector<1x256xf32>
    %60 = vector.broadcast %59 : vector<1x256xf32> to vector<4x256xf32>
    %61 = arith.mulf %58, %60 : vector<4x256xf32>
    %c0_28 = arith.constant 0 : index
    %c0_29 = arith.constant 0 : index
    %62 = vector.load %arg13[%c0_28, %c0_29] : memref<36x256xf32, #tpu.memory_space<vmem>>, vector<4x256xf32>
    tpu.vector_store %arg13[%c0_28, %c0_29], %61 {strides = array<i32>} : memref<36x256xf32, #tpu.memory_space<vmem>>, vector<4x256xf32>,
    %c16_i32 = arith.constant 16 : i32
    %63 = tpu.dynamic_rotate %57 by %c16_i32 dim 1 : vector<4x256xf32>, i32 -> vector<4x256xf32>
    %c1 = arith.constant 1 : index
    %c0_30 = arith.constant 0 : index
    %64 = vector.load %arg3[%c1, %c0_30] : memref<9x256xf32, #tpu.memory_space<vmem>>, vector<1x256xf32>
    %65 = vector.broadcast %64 : vector<1x256xf32> to vector<4x256xf32>
    %66 = arith.mulf %63, %65 : vector<4x256xf32>
    %c4 = arith.constant 4 : index
    %c0_31 = arith.constant 0 : index
    %67 = vector.load %arg13[%c4, %c0_31] : memref<36x256xf32, #tpu.memory_space<vmem>>, vector<4x256xf32>
    tpu.vector_store %arg13[%c4, %c0_31], %66 {strides = array<i32>} : memref<36x256xf32, #tpu.memory_space<vmem>>, vector<4x256xf32>,
    %c15_i32 = arith.constant 15 : i32
    %68 = tpu.dynamic_rotate %57 by %c15_i32 dim 1 : vector<4x256xf32>, i32 -> vector<4x256xf32>
    %c2 = arith.constant 2 : index
    %c0_32 = arith.constant 0 : index
    %69 = vector.load %arg3[%c2, %c0_32] : memref<9x256xf32, #tpu.memory_space<vmem>>, vector<1x256xf32>
    %70 = vector.broadcast %69 : vector<1x256xf32> to vector<4x256xf32>
    %71 = arith.mulf %68, %70 : vector<4x256xf32>
    %c8 = arith.constant 8 : index
    %c0_33 = arith.constant 0 : index
    %72 = vector.load %arg13[%c8, %c0_33] : memref<36x256xf32, #tpu.memory_space<vmem>>, vector<4x256xf32>
    tpu.vector_store %arg13[%c8, %c0_33], %71 {strides = array<i32>} : memref<36x256xf32, #tpu.memory_space<vmem>>, vector<4x256xf32>,
    %c1_i32 = arith.constant 1 : i32
    %73 = tpu.dynamic_rotate %57 by %c1_i32 dim 1 : vector<4x256xf32>, i32 -> vector<4x256xf32>
    %c3 = arith.constant 3 : index
    %c0_34 = arith.constant 0 : index
    %74 = vector.load %arg3[%c3, %c0_34] : memref<9x256xf32, #tpu.memory_space<vmem>>, vector<1x256xf32>
    %75 = vector.broadcast %74 : vector<1x256xf32> to vector<4x256xf32>
    %76 = arith.mulf %73, %75 : vector<4x256xf32>
    %c12 = arith.constant 12 : index
    %c0_35 = arith.constant 0 : index
    %77 = vector.load %arg13[%c12, %c0_35] : memref<36x256xf32, #tpu.memory_space<vmem>>, vector<4x256xf32>
    tpu.vector_store %arg13[%c12, %c0_35], %76 {strides = array<i32>} : memref<36x256xf32, #tpu.memory_space<vmem>>, vector<4x256xf32>,
    %c4_36 = arith.constant 4 : index
    %c0_37 = arith.constant 0 : index
    %78 = vector.load %arg3[%c4_36, %c0_37] : memref<9x256xf32, #tpu.memory_space<vmem>>, vector<1x256xf32>
    %79 = vector.broadcast %78 : vector<1x256xf32> to vector<4x256xf32>
    %80 = arith.mulf %57, %79 : vector<4x256xf32>
    %c16 = arith.constant 16 : index
    %c0_38 = arith.constant 0 : index
    %81 = vector.load %arg13[%c16, %c0_38] : memref<36x256xf32, #tpu.memory_space<vmem>>, vector<4x256xf32>
    tpu.vector_store %arg13[%c16, %c0_38], %80 {strides = array<i32>} : memref<36x256xf32, #tpu.memory_space<vmem>>, vector<4x256xf32>,
    %c255_i32 = arith.constant 255 : i32
    %82 = tpu.dynamic_rotate %57 by %c255_i32 dim 1 : vector<4x256xf32>, i32 -> vector<4x256xf32>
    %c5 = arith.constant 5 : index
    %c0_39 = arith.constant 0 : index
    %83 = vector.load %arg3[%c5, %c0_39] : memref<9x256xf32, #tpu.memory_space<vmem>>, vector<1x256xf32>
    %84 = vector.broadcast %83 : vector<1x256xf32> to vector<4x256xf32>
    %85 = arith.mulf %82, %84 : vector<4x256xf32>
    %c20 = arith.constant 20 : index
    %c0_40 = arith.constant 0 : index
    %86 = vector.load %arg13[%c20, %c0_40] : memref<36x256xf32, #tpu.memory_space<vmem>>, vector<4x256xf32>
    tpu.vector_store %arg13[%c20, %c0_40], %85 {strides = array<i32>} : memref<36x256xf32, #tpu.memory_space<vmem>>, vector<4x256xf32>,
    %c241_i32 = arith.constant 241 : i32
    %87 = tpu.dynamic_rotate %57 by %c241_i32 dim 1 : vector<4x256xf32>, i32 -> vector<4x256xf32>
    %c6 = arith.constant 6 : index
    %c0_41 = arith.constant 0 : index
    %88 = vector.load %arg3[%c6, %c0_41] : memref<9x256xf32, #tpu.memory_space<vmem>>, vector<1x256xf32>
    %89 = vector.broadcast %88 : vector<1x256xf32> to vector<4x256xf32>
    %90 = arith.mulf %87, %89 : vector<4x256xf32>
    %c24 = arith.constant 24 : index
    %c0_42 = arith.constant 0 : index
    %91 = vector.load %arg13[%c24, %c0_42] : memref<36x256xf32, #tpu.memory_space<vmem>>, vector<4x256xf32>
    tpu.vector_store %arg13[%c24, %c0_42], %90 {strides = array<i32>} : memref<36x256xf32, #tpu.memory_space<vmem>>, vector<4x256xf32>,
    %c240_i32 = arith.constant 240 : i32
    %92 = tpu.dynamic_rotate %57 by %c240_i32 dim 1 : vector<4x256xf32>, i32 -> vector<4x256xf32>
    %c7 = arith.constant 7 : index
    %c0_43 = arith.constant 0 : index
    %93 = vector.load %arg3[%c7, %c0_43] : memref<9x256xf32, #tpu.memory_space<vmem>>, vector<1x256xf32>
    %94 = vector.broadcast %93 : vector<1x256xf32> to vector<4x256xf32>
    %95 = arith.mulf %92, %94 : vector<4x256xf32>
    %c28 = arith.constant 28 : index
    %c0_44 = arith.constant 0 : index
    %96 = vector.load %arg13[%c28, %c0_44] : memref<36x256xf32, #tpu.memory_space<vmem>>, vector<4x256xf32>
    tpu.vector_store %arg13[%c28, %c0_44], %95 {strides = array<i32>} : memref<36x256xf32, #tpu.memory_space<vmem>>, vector<4x256xf32>,
    %c239_i32 = arith.constant 239 : i32
    %97 = tpu.dynamic_rotate %57 by %c239_i32 dim 1 : vector<4x256xf32>, i32 -> vector<4x256xf32>
    %c8_45 = arith.constant 8 : index
    %c0_46 = arith.constant 0 : index
    %98 = vector.load %arg3[%c8_45, %c0_46] : memref<9x256xf32, #tpu.memory_space<vmem>>, vector<1x256xf32>
    %99 = vector.broadcast %98 : vector<1x256xf32> to vector<4x256xf32>
    %100 = arith.mulf %97, %99 : vector<4x256xf32>
    %c32 = arith.constant 32 : index
    %c0_47 = arith.constant 0 : index
    %101 = vector.load %arg13[%c32, %c0_47] : memref<36x256xf32, #tpu.memory_space<vmem>>, vector<4x256xf32>
    tpu.vector_store %arg13[%c32, %c0_47], %100 {strides = array<i32>} : memref<36x256xf32, #tpu.memory_space<vmem>>, vector<4x256xf32>,
    %c0_48 = arith.constant 0 : index
    %c0_49 = arith.constant 0 : index
    %102 = vector.load %arg6[%c0_48, %c0_49] : memref<4x36xf32, #tpu.memory_space<vmem>>, vector<4x36xf32>
    %c0_50 = arith.constant 0 : index
    %c0_51 = arith.constant 0 : index
    %103 = vector.load %arg13[%c0_50, %c0_51] : memref<36x256xf32, #tpu.memory_space<vmem>>, vector<36x256xf32>
    %cst_52 = arith.constant dense<0.000000e+00> : vector<4x256xf32>
    %104 = tpu.matmul %102, %103, %cst_52 {dimension_numbers = #tpu.dot_dimension_numbers<[1], [0], [0], [1], [0, 0, 1, 1], [], []>} : vector<4x36xf32>, vector<36x256xf32>, vector<4x256xf32> -> vector<4x256xf32>
    %c0_53 = arith.constant 0 : index
    %c0_54 = arith.constant 0 : index
    %105 = vector.load %arg7[%c0_53, %c0_54] : memref<4x1xf32, #tpu.memory_space<vmem>>, vector<4x1xf32>
    %106 = vector.broadcast %105 : vector<4x1xf32> to vector<4x256xf32>
    %107 = arith.addf %104, %106 : vector<4x256xf32>
    %cst_55 = arith.constant dense<0.000000e+00> : vector<4x256xf32>
    %108 = tpu.matmul %107, %2, %cst_55 {dimension_numbers = #tpu.dot_dimension_numbers<[1], [0], [0], [1], [0, 0, 1, 1], [], []>} : vector<4x256xf32>, vector<256x256xf32>, vector<4x256xf32> -> vector<4x256xf32>
    %109 = arith.subf %107, %108 : vector<4x256xf32>
    %110 = arith.mulf %109, %109 : vector<4x256xf32>
    %cst_56 = arith.constant dense<0.000000e+00> : vector<4x256xf32>
    %111 = tpu.matmul %110, %2, %cst_56 {dimension_numbers = #tpu.dot_dimension_numbers<[1], [0], [0], [1], [0, 0, 1, 1], [], []>} : vector<4x256xf32>, vector<256x256xf32>, vector<4x256xf32> -> vector<4x256xf32>
    %cst_57 = arith.constant 9.99999974E-6 : f32
    %112 = vector.broadcast %cst_57 : f32 to vector<4x256xf32>
    %113 = arith.addf %111, %112 : vector<4x256xf32>
    %114 = math.rsqrt %113 : vector<4x256xf32>
    %115 = arith.mulf %109, %114 : vector<4x256xf32>
    %c0_58 = arith.constant 0 : index
    %c0_59 = arith.constant 0 : index
    %116 = vector.load %arg8[%c0_58, %c0_59] : memref<1x256xf32, #tpu.memory_space<vmem>>, vector<1x256xf32>
    %117 = vector.broadcast %116 : vector<1x256xf32> to vector<4x256xf32>
    %118 = arith.mulf %115, %117 : vector<4x256xf32>
    %c0_60 = arith.constant 0 : index
    %c0_61 = arith.constant 0 : index
    %119 = vector.load %arg9[%c0_60, %c0_61] : memref<1x256xf32, #tpu.memory_space<vmem>>, vector<1x256xf32>
    %120 = vector.broadcast %119 : vector<1x256xf32> to vector<4x256xf32>
    %121 = arith.addf %118, %120 : vector<4x256xf32>
    %cst_62 = arith.constant 5.000000e-01 : f32
    %122 = vector.broadcast %cst_62 : f32 to vector<4x256xf32>
    %123 = arith.mulf %122, %121 : vector<4x256xf32>
    %cst_63 = arith.constant 0.707106769 : f32
    %124 = vector.broadcast %cst_63 : f32 to vector<4x256xf32>
    %125 = arith.mulf %121, %124 : vector<4x256xf32>
    %cst_64 = arith.constant 0.000000e+00 : f32
    %126 = vector.broadcast %cst_64 : f32 to vector<4x256xf32>
    %127 = arith.cmpf oge, %125, %126 : vector<4x256xf32>
    %cst_65 = arith.constant 1.000000e+00 : f32
    %cst_66 = arith.constant -1.000000e+00 : f32
    %128 = vector.broadcast %cst_65 : f32 to vector<4x256xf32>
    %129 = vector.broadcast %cst_66 : f32 to vector<4x256xf32>
    %130 = arith.select %127, %128, %129 : vector<4x256xi1>, vector<4x256xf32>
    %131 = math.absf %125 : vector<4x256xf32>
    %cst_67 = arith.constant 0.327591091 : f32
    %132 = vector.broadcast %cst_67 : f32 to vector<4x256xf32>
    %133 = arith.mulf %132, %131 : vector<4x256xf32>
    %cst_68 = arith.constant 1.000000e+00 : f32
    %134 = vector.broadcast %cst_68 : f32 to vector<4x256xf32>
    %135 = arith.addf %134, %133 : vector<4x256xf32>
    %cst_69 = arith.constant 1.000000e+00 : f32
    %136 = vector.broadcast %cst_69 : f32 to vector<4x256xf32>
    %137 = arith.divf %136, %135 : vector<4x256xf32>
    %cst_70 = arith.constant 1.06140542 : f32
    %138 = vector.broadcast %cst_70 : f32 to vector<4x256xf32>
    %139 = arith.mulf %138, %137 : vector<4x256xf32>
    %cst_71 = arith.constant -1.45315206 : f32
    %140 = vector.broadcast %cst_71 : f32 to vector<4x256xf32>
    %141 = arith.addf %139, %140 : vector<4x256xf32>
    %142 = arith.mulf %141, %137 : vector<4x256xf32>
    %cst_72 = arith.constant 1.42141378 : f32
    %143 = vector.broadcast %cst_72 : f32 to vector<4x256xf32>
    %144 = arith.addf %142, %143 : vector<4x256xf32>
    %145 = arith.mulf %144, %137 : vector<4x256xf32>
    %cst_73 = arith.constant -0.284496725 : f32
    %146 = vector.broadcast %cst_73 : f32 to vector<4x256xf32>
    %147 = arith.addf %145, %146 : vector<4x256xf32>
    %148 = arith.mulf %147, %137 : vector<4x256xf32>
    %cst_74 = arith.constant 0.254829586 : f32
    %149 = vector.broadcast %cst_74 : f32 to vector<4x256xf32>
    %150 = arith.addf %148, %149 : vector<4x256xf32>
    %151 = arith.mulf %150, %137 : vector<4x256xf32>
    %cst_75 = arith.constant 0.000000e+00 : f32
    %152 = vector.broadcast %cst_75 : f32 to vector<4x256xf32>
    %153 = arith.subf %152, %131 : vector<4x256xf32>
    %154 = arith.mulf %153, %131 : vector<4x256xf32>
    %155 = math.exp %154 : vector<4x256xf32>
    %156 = arith.mulf %151, %155 : vector<4x256xf32>
    %cst_76 = arith.constant 1.000000e+00 : f32
    %157 = vector.broadcast %cst_76 : f32 to vector<4x256xf32>
    %158 = arith.subf %157, %156 : vector<4x256xf32>
    %159 = arith.mulf %130, %158 : vector<4x256xf32>
    %cst_77 = arith.constant 1.000000e+00 : f32
    %160 = vector.broadcast %cst_77 : f32 to vector<4x256xf32>
    %161 = arith.addf %160, %159 : vector<4x256xf32>
    %162 = arith.mulf %123, %161 : vector<4x256xf32>
    %c17_i32_78 = arith.constant 17 : i32
    %163 = tpu.dynamic_rotate %162 by %c17_i32_78 dim 1 : vector<4x256xf32>, i32 -> vector<4x256xf32>
    %c0_79 = arith.constant 0 : index
    %c0_80 = arith.constant 0 : index
    %164 = vector.load %arg3[%c0_79, %c0_80] : memref<9x256xf32, #tpu.memory_space<vmem>>, vector<1x256xf32>
    %165 = vector.broadcast %164 : vector<1x256xf32> to vector<4x256xf32>
    %166 = arith.mulf %163, %165 : vector<4x256xf32>
    %c0_81 = arith.constant 0 : index
    %c0_82 = arith.constant 0 : index
    %167 = vector.load %arg13[%c0_81, %c0_82] : memref<36x256xf32, #tpu.memory_space<vmem>>, vector<4x256xf32>
    tpu.vector_store %arg13[%c0_81, %c0_82], %166 {strides = array<i32>} : memref<36x256xf32, #tpu.memory_space<vmem>>, vector<4x256xf32>,
    %c16_i32_83 = arith.constant 16 : i32
    %168 = tpu.dynamic_rotate %162 by %c16_i32_83 dim 1 : vector<4x256xf32>, i32 -> vector<4x256xf32>
    %c1_84 = arith.constant 1 : index
    %c0_85 = arith.constant 0 : index
    %169 = vector.load %arg3[%c1_84, %c0_85] : memref<9x256xf32, #tpu.memory_space<vmem>>, vector<1x256xf32>
    %170 = vector.broadcast %169 : vector<1x256xf32> to vector<4x256xf32>
    %171 = arith.mulf %168, %170 : vector<4x256xf32>
    %c4_86 = arith.constant 4 : index
    %c0_87 = arith.constant 0 : index
    %172 = vector.load %arg13[%c4_86, %c0_87] : memref<36x256xf32, #tpu.memory_space<vmem>>, vector<4x256xf32>
    tpu.vector_store %arg13[%c4_86, %c0_87], %171 {strides = array<i32>} : memref<36x256xf32, #tpu.memory_space<vmem>>, vector<4x256xf32>,
    %c15_i32_88 = arith.constant 15 : i32
    %173 = tpu.dynamic_rotate %162 by %c15_i32_88 dim 1 : vector<4x256xf32>, i32 -> vector<4x256xf32>
    %c2_89 = arith.constant 2 : index
    %c0_90 = arith.constant 0 : index
    %174 = vector.load %arg3[%c2_89, %c0_90] : memref<9x256xf32, #tpu.memory_space<vmem>>, vector<1x256xf32>
    %175 = vector.broadcast %174 : vector<1x256xf32> to vector<4x256xf32>
    %176 = arith.mulf %173, %175 : vector<4x256xf32>
    %c8_91 = arith.constant 8 : index
    %c0_92 = arith.constant 0 : index
    %177 = vector.load %arg13[%c8_91, %c0_92] : memref<36x256xf32, #tpu.memory_space<vmem>>, vector<4x256xf32>
    tpu.vector_store %arg13[%c8_91, %c0_92], %176 {strides = array<i32>} : memref<36x256xf32, #tpu.memory_space<vmem>>, vector<4x256xf32>,
    %c1_i32_93 = arith.constant 1 : i32
    %178 = tpu.dynamic_rotate %162 by %c1_i32_93 dim 1 : vector<4x256xf32>, i32 -> vector<4x256xf32>
    %c3_94 = arith.constant 3 : index
    %c0_95 = arith.constant 0 : index
    %179 = vector.load %arg3[%c3_94, %c0_95] : memref<9x256xf32, #tpu.memory_space<vmem>>, vector<1x256xf32>
    %180 = vector.broadcast %179 : vector<1x256xf32> to vector<4x256xf32>
    %181 = arith.mulf %178, %180 : vector<4x256xf32>
    %c12_96 = arith.constant 12 : index
    %c0_97 = arith.constant 0 : index
    %182 = vector.load %arg13[%c12_96, %c0_97] : memref<36x256xf32, #tpu.memory_space<vmem>>, vector<4x256xf32>
    tpu.vector_store %arg13[%c12_96, %c0_97], %181 {strides = array<i32>} : memref<36x256xf32, #tpu.memory_space<vmem>>, vector<4x256xf32>,
    %c4_98 = arith.constant 4 : index
    %c0_99 = arith.constant 0 : index
    %183 = vector.load %arg3[%c4_98, %c0_99] : memref<9x256xf32, #tpu.memory_space<vmem>>, vector<1x256xf32>
    %184 = vector.broadcast %183 : vector<1x256xf32> to vector<4x256xf32>
    %185 = arith.mulf %162, %184 : vector<4x256xf32>
    %c16_100 = arith.constant 16 : index
    %c0_101 = arith.constant 0 : index
    %186 = vector.load %arg13[%c16_100, %c0_101] : memref<36x256xf32, #tpu.memory_space<vmem>>, vector<4x256xf32>
    tpu.vector_store %arg13[%c16_100, %c0_101], %185 {strides = array<i32>} : memref<36x256xf32, #tpu.memory_space<vmem>>, vector<4x256xf32>,
    %c255_i32_102 = arith.constant 255 : i32
    %187 = tpu.dynamic_rotate %162 by %c255_i32_102 dim 1 : vector<4x256xf32>, i32 -> vector<4x256xf32>
    %c5_103 = arith.constant 5 : index
    %c0_104 = arith.constant 0 : index
    %188 = vector.load %arg3[%c5_103, %c0_104] : memref<9x256xf32, #tpu.memory_space<vmem>>, vector<1x256xf32>
    %189 = vector.broadcast %188 : vector<1x256xf32> to vector<4x256xf32>
    %190 = arith.mulf %187, %189 : vector<4x256xf32>
    %c20_105 = arith.constant 20 : index
    %c0_106 = arith.constant 0 : index
    %191 = vector.load %arg13[%c20_105, %c0_106] : memref<36x256xf32, #tpu.memory_space<vmem>>, vector<4x256xf32>
    tpu.vector_store %arg13[%c20_105, %c0_106], %190 {strides = array<i32>} : memref<36x256xf32, #tpu.memory_space<vmem>>, vector<4x256xf32>,
    %c241_i32_107 = arith.constant 241 : i32
    %192 = tpu.dynamic_rotate %162 by %c241_i32_107 dim 1 : vector<4x256xf32>, i32 -> vector<4x256xf32>
    %c6_108 = arith.constant 6 : index
    %c0_109 = arith.constant 0 : index
    %193 = vector.load %arg3[%c6_108, %c0_109] : memref<9x256xf32, #tpu.memory_space<vmem>>, vector<1x256xf32>
    %194 = vector.broadcast %193 : vector<1x256xf32> to vector<4x256xf32>
    %195 = arith.mulf %192, %194 : vector<4x256xf32>
    %c24_110 = arith.constant 24 : index
    %c0_111 = arith.constant 0 : index
    %196 = vector.load %arg13[%c24_110, %c0_111] : memref<36x256xf32, #tpu.memory_space<vmem>>, vector<4x256xf32>
    tpu.vector_store %arg13[%c24_110, %c0_111], %195 {strides = array<i32>} : memref<36x256xf32, #tpu.memory_space<vmem>>, vector<4x256xf32>,
    %c240_i32_112 = arith.constant 240 : i32
    %197 = tpu.dynamic_rotate %162 by %c240_i32_112 dim 1 : vector<4x256xf32>, i32 -> vector<4x256xf32>
    %c7_113 = arith.constant 7 : index
    %c0_114 = arith.constant 0 : index
    %198 = vector.load %arg3[%c7_113, %c0_114] : memref<9x256xf32, #tpu.memory_space<vmem>>, vector<1x256xf32>
    %199 = vector.broadcast %198 : vector<1x256xf32> to vector<4x256xf32>
    %200 = arith.mulf %197, %199 : vector<4x256xf32>
    %c28_115 = arith.constant 28 : index
    %c0_116 = arith.constant 0 : index
    %201 = vector.load %arg13[%c28_115, %c0_116] : memref<36x256xf32, #tpu.memory_space<vmem>>, vector<4x256xf32>
    tpu.vector_store %arg13[%c28_115, %c0_116], %200 {strides = array<i32>} : memref<36x256xf32, #tpu.memory_space<vmem>>, vector<4x256xf32>,
    %c239_i32_117 = arith.constant 239 : i32
    %202 = tpu.dynamic_rotate %162 by %c239_i32_117 dim 1 : vector<4x256xf32>, i32 -> vector<4x256xf32>
    %c8_118 = arith.constant 8 : index
    %c0_119 = arith.constant 0 : index
    %203 = vector.load %arg3[%c8_118, %c0_119] : memref<9x256xf32, #tpu.memory_space<vmem>>, vector<1x256xf32>
    %204 = vector.broadcast %203 : vector<1x256xf32> to vector<4x256xf32>
    %205 = arith.mulf %202, %204 : vector<4x256xf32>
    %c32_120 = arith.constant 32 : index
    %c0_121 = arith.constant 0 : index
    %206 = vector.load %arg13[%c32_120, %c0_121] : memref<36x256xf32, #tpu.memory_space<vmem>>, vector<4x256xf32>
    tpu.vector_store %arg13[%c32_120, %c0_121], %205 {strides = array<i32>} : memref<36x256xf32, #tpu.memory_space<vmem>>, vector<4x256xf32>,
    %c0_122 = arith.constant 0 : index
    %c0_123 = arith.constant 0 : index
    %207 = vector.load %arg10[%c0_122, %c0_123] : memref<4x36xf32, #tpu.memory_space<vmem>>, vector<4x36xf32>
    %c0_124 = arith.constant 0 : index
    %c0_125 = arith.constant 0 : index
    %208 = vector.load %arg13[%c0_124, %c0_125] : memref<36x256xf32, #tpu.memory_space<vmem>>, vector<36x256xf32>
    %cst_126 = arith.constant dense<0.000000e+00> : vector<4x256xf32>
    %209 = tpu.matmul %207, %208, %cst_126 {dimension_numbers = #tpu.dot_dimension_numbers<[1], [0], [0], [1], [0, 0, 1, 1], [], []>} : vector<4x36xf32>, vector<36x256xf32>, vector<4x256xf32> -> vector<4x256xf32>
    %c0_127 = arith.constant 0 : index
    %c0_128 = arith.constant 0 : index
    %210 = vector.load %arg11[%c0_127, %c0_128] : memref<4x1xf32, #tpu.memory_space<vmem>>, vector<4x1xf32>
    %211 = vector.broadcast %210 : vector<4x1xf32> to vector<4x256xf32>
    %212 = arith.addf %209, %211 : vector<4x256xf32>
    %213 = arith.addf %1, %212 : vector<4x256xf32>
    %c0_129 = arith.constant 0 : index
    %c0_130 = arith.constant 0 : index
    %c0_131 = arith.constant 0 : index
    %214 = vector.load %arg12[%c0_129, %c0_130, %c0_131] : memref<1x4x256xf32, #tpu.memory_space<vmem>>, vector<1x4x256xf32>
    %215 = vector.shape_cast %214 : vector<1x4x256xf32> to vector<4x256xf32>
    %216 = vector.shape_cast %213 : vector<4x256xf32> to vector<1x4x256xf32>
    tpu.vector_store %arg12[%c0_129, %c0_130, %c0_131], %216 {strides = array<i32>} : memref<1x4x256xf32, #tpu.memory_space<vmem>>, vector<1x4x256xf32>,
    return
  }
  func.func @transform_0(%arg0: i32) -> (i32, i32, i32) {
    %c0_i32 = arith.constant 0 : i32
    %c0_i32_0 = arith.constant 0 : i32
    %c0_i32_1 = arith.constant 0 : i32
    return %arg0, %c0_i32, %c0_i32_0 : i32, i32, i32
  }
  func.func @transform_1(%arg0: i32) -> (i32, i32) {
    %c0_i32 = arith.constant 0 : i32
    %c0_i32_0 = arith.constant 0 : i32
    %c0_i32_1 = arith.constant 0 : i32
    return %c0_i32, %c0_i32_0 : i32, i32
  }
  func.func @transform_2(%arg0: i32) -> (i32, i32) {
    %c0_i32 = arith.constant 0 : i32
    %c0_i32_0 = arith.constant 0 : i32
    %c0_i32_1 = arith.constant 0 : i32
    return %c0_i32, %c0_i32_0 : i32, i32
  }
  func.func @transform_3(%arg0: i32) -> (i32, i32) {
    %c0_i32 = arith.constant 0 : i32
    %c0_i32_0 = arith.constant 0 : i32
    %c0_i32_1 = arith.constant 0 : i32
    return %c0_i32, %c0_i32_0 : i32, i32
  }
  func.func @transform_4(%arg0: i32) -> (i32, i32) {
    %c0_i32 = arith.constant 0 : i32
    %c0_i32_0 = arith.constant 0 : i32
    %c0_i32_1 = arith.constant 0 : i32
    return %c0_i32, %c0_i32_0 : i32, i32
  }
  func.func @transform_5(%arg0: i32) -> (i32, i32) {
    %c0_i32 = arith.constant 0 : i32
    %c0_i32_0 = arith.constant 0 : i32
    %c0_i32_1 = arith.constant 0 : i32
    return %c0_i32, %c0_i32_0 : i32, i32
  }
  func.func @transform_6(%arg0: i32) -> (i32, i32) {
    %c0_i32 = arith.constant 0 : i32
    %c0_i32_0 = arith.constant 0 : i32
    %c0_i32_1 = arith.constant 0 : i32
    return %c0_i32, %c0_i32_0 : i32, i32
  }
  func.func @transform_7(%arg0: i32) -> (i32, i32) {
    %c0_i32 = arith.constant 0 : i32
    %c0_i32_0 = arith.constant 0 : i32
    %c0_i32_1 = arith.constant 0 : i32
    return %c0_i32, %c0_i32_0 : i32, i32
  }
  func.func @transform_8(%arg0: i32) -> (i32, i32) {
    %c0_i32 = arith.constant 0 : i32
    %c0_i32_0 = arith.constant 0 : i32
    %c0_i32_1 = arith.constant 0 : i32
    return %c0_i32, %c0_i32_0 : i32, i32
  }
  func.func @transform_9(%arg0: i32) -> (i32, i32) {
    %c0_i32 = arith.constant 0 : i32
    %c0_i32_0 = arith.constant 0 : i32
    %c0_i32_1 = arith.constant 0 : i32
    return %c0_i32, %c0_i32_0 : i32, i32
  }
  func.func @transform_10(%arg0: i32) -> (i32, i32) {
    %c0_i32 = arith.constant 0 : i32
    %c0_i32_0 = arith.constant 0 : i32
    %c0_i32_1 = arith.constant 0 : i32
    return %c0_i32, %c0_i32_0 : i32, i32
  }
  func.func @transform_11(%arg0: i32) -> (i32, i32, i32) {
    %c0_i32 = arith.constant 0 : i32
    %c0_i32_0 = arith.constant 0 : i32
    %c0_i32_1 = arith.constant 0 : i32
    return %arg0, %c0_i32, %c0_i32_0 : i32, i32, i32
  }
}

</mosaic_0001>

<llo_original>
// kernel: tpu_custom_call.1
$region0: #{tpu_custom_call.1}
  #allocation0 [shape = 'u32[]', space=smem, size = 0x4, offset = 0x4, fixed_abs, tag = 'smem constant byte address 0x4 - core index']
  #allocation1 [shape = 'u32[144,128]{1,0:T(1,128)}', space=vmem, size = 0x12000, scoped, tag = 'internal scratch']
  #allocation2 [shape = 'f32[36,256]{1,0:T(8,128)}', space=vmem, size = 0xa000, scoped, tag = 'scratch operand']
  %s0 = inlined_call_operand.hbm [shape: f32[2,4,256], index: 0, kind: input, shape index: {}]
  %s1 = inlined_call_operand.hbm [shape: f32[256,256], index: 1, kind: input, shape index: {}]
  %s2 = inlined_call_operand.hbm [shape: f32[9,256], index: 2, kind: input, shape index: {}]
  %s3 = inlined_call_operand.vmem [shape: f32[1,256], index: 3, kind: input, shape index: {}]
  %s4 = inlined_call_operand.vmem [shape: f32[1,256], index: 4, kind: input, shape index: {}]
  %s5 = inlined_call_operand.vmem [shape: f32[4,36], index: 5, kind: input, shape index: {}]
  %s6 = inlined_call_operand.vmem [shape: f32[4,1], index: 6, kind: input, shape index: {}]
  %s7 = inlined_call_operand.vmem [shape: f32[1,256], index: 7, kind: input, shape index: {}]
  %s8 = inlined_call_operand.vmem [shape: f32[1,256], index: 8, kind: input, shape index: {}]
  %s9 = inlined_call_operand.vmem [shape: f32[4,36], index: 9, kind: input, shape index: {}]
  %s10 = inlined_call_operand.vmem [shape: f32[4,1], index: 10, kind: input, shape index: {}]
  %s11 = inlined_call_operand.hbm [shape: f32[2,4,256], index: 11, kind: output, shape index: {}]
  %s12 = sld [smem:[#allocation0]]
  $region89: #{tpu_custom_call.1} parent=0
    _
  %s14 = ssub.s32 1, %s12
  %s15 = scalar_select 0, %s14, %s12
  $region1: #{tpu_custom_call.1} parent=0
    #allocation3 [shape = 'u8[8192]{0}', space=vmem, size = 0x2000, scoped, tag = 'input window, operand 0']
    #allocation4 [shape = 's32[2]{0}', space=sflag, size = 0x8, scoped, tag = 'scoped memory for tpu_custom_call.1']
    #allocation5 [shape = 's32[2]{0}', space=sflag, size = 0x8, scoped, tag = 'scoped memory for tpu_custom_call.1']
    #allocation6 [shape = 'u8[262144]{0}', space=vmem, size = 0x40000, scoped, tag = 'input window, operand 1, single buffered']
    #allocation7 [shape = 's32[1]{0}', space=sflag, size = 0x4, scoped, tag = 'scoped memory for tpu_custom_call.1']
    #allocation8 [shape = 'u8[16384]{0}', space=vmem, size = 0x4000, scoped, tag = 'input window, operand 2, single buffered']
    #allocation9 [shape = 'u8[8192]{0}', space=vmem, size = 0x2000, scoped, tag = 'output window, operand 0']
    %16 = vsyncpa [#allocation4], 0
    %s17 = scalar_lea.sflag [#allocation4], 1
    %18 = vsyncpa %s17, 0
    %19 = vsyncpa [#allocation7], 0
    %20 = vsyncpa [#allocation5], 0
    %s21 = scalar_lea.sflag [#allocation5], 1
    %22 = vsyncpa %s21, 0
    loop: start=0, step=1, limit=4
    $region2: #{tpu_custom_call.1} parent=1 // loop_pre_header
      _
    $region3: #{tpu_custom_call.1} parent=1 // loop_header
      %s24 = sphi 0, %s28
      %p25 = scmp.ge.s32.totalorder %s24, 4
      %s34 = sphi 0, %s36
      %s37 = sphi 0, %s34
      %s38 = sphi 0, %s37
      %s54 = sphi 0, %s38
      %s58 = sphi 0, %s58
      %s60 = sphi 0, %s58
      %s61 = sphi 0, %s60
      %s75 = sphi 0, %s61
      %s79 = sphi 0, %s79
      %s81 = sphi 0, %s79
      %s82 = sphi 0, %s81
      %s96 = sphi 0, %s82
      %s100 = sphi 0, %s100
      %s102 = sphi 0, %s100
      %s103 = sphi 0, %s102
      %s117 = sphi 0, %s103
      %s121 = sphi 0, %s121
      %s123 = sphi 0, %s121
      %s124 = sphi 0, %s123
      %s138 = sphi 0, %s124
      %s142 = sphi 0, %s142
      %s144 = sphi 0, %s142
      %s145 = sphi 0, %s144
      %s159 = sphi 0, %s145
      %s163 = sphi 0, %s163
      %s165 = sphi 0, %s163
      %s166 = sphi 0, %s165
      %s180 = sphi 0, %s166
      %s184 = sphi 0, %s184
      %s186 = sphi 0, %s184
      %s187 = sphi 0, %s186
      %s201 = sphi 0, %s187
      %s205 = sphi 0, %s205
      %s207 = sphi 0, %s205
      %s208 = sphi 0, %s207
      %s222 = sphi 0, %s208
      %s226 = sphi 0, %s226
      %s228 = sphi 0, %s226
      %s229 = sphi 0, %s228
      %s243 = sphi 0, %s229
      %s247 = sphi 0, %s247
      %s249 = sphi 0, %s247
      %s250 = sphi 0, %s249
      %s264 = sphi 0, %s250
      %s270 = sphi 0, %s272
      %s273 = sphi 0, %s270
      %s274 = sphi 0, %s273
      %s290 = sphi 0, %s274
    $region4: #{tpu_custom_call.1} parent=1 // loop_header_branch
      %27 = sbr.rel (%p25) target = $region8
    $region5: #{tpu_custom_call.1} parent=1 // loop_body
      %s29 = ssub.s32 %s24, 1
      %s30 = ssub.s32 %s24, 2
      %s31 = sadd.s32 %s24, 1
      %s32 = ssub.s32 %s24, %s31
      %p33 = scmp.eq.s32.totalorder %s32, 0
      %s35 = sadd.s32 %s34, 1
      %s36 = scalar_select %p33, %s34, %s35
      %p39 = pneg %p33
      %p40 = scmp.eq.s32.totalorder %s24, 1
      %p41 = por %p39, %p40
      %p42 = scmp.ne.s32.totalorder %s34, %s37
      %p43 = scmp.eq.s32.totalorder %s24, 0
      %p44 = por %p42, %p43
      %p45 = scmp.ne.s32.totalorder %s34, %s37
      %p46 = scmp.eq.s32.totalorder %s29, 1
      %p47 = por %p45, %p46
      %p48 = scmp.ne.s32.totalorder %s37, %s38
      %p49 = scmp.eq.s32.totalorder %s29, 0
      %p50 = por %p48, %p49
      %p51 = scmp.ne.s32.totalorder %s37, %s38
      %p52 = scmp.eq.s32.totalorder %s30, 1
      %p53 = por %p51, %p52
      %p55 = scmp.ne.s32.totalorder %s38, %s54
      %p56 = scmp.eq.s32.totalorder %s30, 0
      %p57 = por %p55, %p56
      %s59 = sadd.s32 %s58, 1
      %p62 = scmp.eq.s32.totalorder %s24, 1
      %p63 = scmp.ne.s32.totalorder %s58, %s60
      %p64 = scmp.eq.s32.totalorder %s24, 0
      %p65 = por %p63, %p64
      %p66 = scmp.ne.s32.totalorder %s58, %s60
      %p67 = scmp.eq.s32.totalorder %s29, 1
      %p68 = por %p66, %p67
      %p69 = scmp.ne.s32.totalorder %s60, %s61
      %p70 = scmp.eq.s32.totalorder %s29, 0
      %p71 = por %p69, %p70
      %p72 = scmp.ne.s32.totalorder %s60, %s61
      %p73 = scmp.eq.s32.totalorder %s30, 1
      %p74 = por %p72, %p73
      %p76 = scmp.ne.s32.totalorder %s61, %s75
      %p77 = scmp.eq.s32.totalorder %s30, 0
      %p78 = por %p76, %p77
      %s80 = sadd.s32 %s79, 1
      %p83 = scmp.eq.s32.totalorder %s24, 1
      %p84 = scmp.ne.s32.totalorder %s79, %s81
      %p85 = scmp.eq.s32.totalorder %s24, 0
      %p86 = por %p84, %p85
      %p87 = scmp.ne.s32.totalorder %s79, %s81
      %p88 = scmp.eq.s32.totalorder %s29, 1
      %p89 = por %p87, %p88
      %p90 = scmp.ne.s32.totalorder %s81, %s82
      %p91 = scmp.eq.s32.totalorder %s29, 0
      %p92 = por %p90, %p91
      %p93 = scmp.ne.s32.totalorder %s81, %s82
      %p94 = scmp.eq.s32.totalorder %s30, 1
      %p95 = por %p93, %p94
      %p97 = scmp.ne.s32.totalorder %s82, %s96
      %p98 = scmp.eq.s32.totalorder %s30, 0
      %p99 = por %p97, %p98
      %s101 = sadd.s32 %s100, 1
      %p104 = scmp.eq.s32.totalorder %s24, 1
      %p105 = scmp.ne.s32.totalorder %s100, %s102
      %p106 = scmp.eq.s32.totalorder %s24, 0
      %p107 = por %p105, %p106
      %p108 = scmp.ne.s32.totalorder %s100, %s102
      %p109 = scmp.eq.s32.totalorder %s29, 1
      %p110 = por %p108, %p109
      %p111 = scmp.ne.s32.totalorder %s102, %s103
      %p112 = scmp.eq.s32.totalorder %s29, 0
      %p113 = por %p111, %p112
      %p114 = scmp.ne.s32.totalorder %s102, %s103
      %p115 = scmp.eq.s32.totalorder %s30, 1
      %p116 = por %p114, %p115
      %p118 = scmp.ne.s32.totalorder %s103, %s117
      %p119 = scmp.eq.s32.totalorder %s30, 0
      %p120 = por %p118, %p119
      %s122 = sadd.s32 %s121, 1
      %p125 = scmp.eq.s32.totalorder %s24, 1
      %p126 = scmp.ne.s32.totalorder %s121, %s123
      %p127 = scmp.eq.s32.totalorder %s24, 0
      %p128 = por %p126, %p127
      %p129 = scmp.ne.s32.totalorder %s121, %s123
      %p130 = scmp.eq.s32.totalorder %s29, 1
      %p131 = por %p129, %p130
      %p132 = scmp.ne.s32.totalorder %s123, %s124
      %p133 = scmp.eq.s32.totalorder %s29, 0
      %p134 = por %p132, %p133
      %p135 = scmp.ne.s32.totalorder %s123, %s124
      %p136 = scmp.eq.s32.totalorder %s30, 1
      %p137 = por %p135, %p136
      %p139 = scmp.ne.s32.totalorder %s124, %s138
      %p140 = scmp.eq.s32.totalorder %s30, 0
      %p141 = por %p139, %p140
      %s143 = sadd.s32 %s142, 1
      %p146 = scmp.eq.s32.totalorder %s24, 1
      %p147 = scmp.ne.s32.totalorder %s142, %s144
      %p148 = scmp.eq.s32.totalorder %s24, 0
      %p149 = por %p147, %p148
      %p150 = scmp.ne.s32.totalorder %s142, %s144
      %p151 = scmp.eq.s32.totalorder %s29, 1
      %p152 = por %p150, %p151
      %p153 = scmp.ne.s32.totalorder %s144, %s145
      %p154 = scmp.eq.s32.totalorder %s29, 0
      %p155 = por %p153, %p154
      %p156 = scmp.ne.s32.totalorder %s144, %s145
      %p157 = scmp.eq.s32.totalorder %s30, 1
      %p158 = por %p156, %p157
      %p160 = scmp.ne.s32.totalorder %s145, %s159
      %p161 = scmp.eq.s32.totalorder %s30, 0
      %p162 = por %p160, %p161
      %s164 = sadd.s32 %s163, 1
      %p167 = scmp.eq.s32.totalorder %s24, 1
      %p168 = scmp.ne.s32.totalorder %s163, %s165
      %p169 = scmp.eq.s32.totalorder %s24, 0
      %p170 = por %p168, %p169
      %p171 = scmp.ne.s32.totalorder %s163, %s165
      %p172 = scmp.eq.s32.totalorder %s29, 1
      %p173 = por %p171, %p172
      %p174 = scmp.ne.s32.totalorder %s165, %s166
      %p175 = scmp.eq.s32.totalorder %s29, 0
      %p176 = por %p174, %p175
      %p177 = scmp.ne.s32.totalorder %s165, %s166
      %p178 = scmp.eq.s32.totalorder %s30, 1
      %p179 = por %p177, %p178
      %p181 = scmp.ne.s32.totalorder %s166, %s180
      %p182 = scmp.eq.s32.totalorder %s30, 0
      %p183 = por %p181, %p182
      %s185 = sadd.s32 %s184, 1
      %p188 = scmp.eq.s32.totalorder %s24, 1
      %p189 = scmp.ne.s32.totalorder %s184, %s186
      %p190 = scmp.eq.s32.totalorder %s24, 0
      %p191 = por %p189, %p190
      %p192 = scmp.ne.s32.totalorder %s184, %s186
      %p193 = scmp.eq.s32.totalorder %s29, 1
      %p194 = por %p192, %p193
      %p195 = scmp.ne.s32.totalorder %s186, %s187
      %p196 = scmp.eq.s32.totalorder %s29, 0
      %p197 = por %p195, %p196
      %p198 = scmp.ne.s32.totalorder %s186, %s187
      %p199 = scmp.eq.s32.totalorder %s30, 1
      %p200 = por %p198, %p199
      %p202 = scmp.ne.s32.totalorder %s187, %s201
      %p203 = scmp.eq.s32.totalorder %s30, 0
      %p204 = por %p202, %p203
      %s206 = sadd.s32 %s205, 1
      %p209 = scmp.eq.s32.totalorder %s24, 1
      %p210 = scmp.ne.s32.totalorder %s205, %s207
      %p211 = scmp.eq.s32.totalorder %s24, 0
      %p212 = por %p210, %p211
      %p213 = scmp.ne.s32.totalorder %s205, %s207
      %p214 = scmp.eq.s32.totalorder %s29, 1
      %p215 = por %p213, %p214
      %p216 = scmp.ne.s32.totalorder %s207, %s208
      %p217 = scmp.eq.s32.totalorder %s29, 0
      %p218 = por %p216, %p217
      %p219 = scmp.ne.s32.totalorder %s207, %s208
      %p220 = scmp.eq.s32.totalorder %s30, 1
      %p221 = por %p219, %p220
      %p223 = scmp.ne.s32.totalorder %s208, %s222
      %p224 = scmp.eq.s32.totalorder %s30, 0
      %p225 = por %p223, %p224
      %s227 = sadd.s32 %s226, 1
      %p230 = scmp.eq.s32.totalorder %s24, 1
      %p231 = scmp.ne.s32.totalorder %s226, %s228
      %p232 = scmp.eq.s32.totalorder %s24, 0
      %p233 = por %p231, %p232
      %p234 = scmp.ne.s32.totalorder %s226, %s228
      %p235 = scmp.eq.s32.totalorder %s29, 1
      %p236 = por %p234, %p235
      %p237 = scmp.ne.s32.totalorder %s228, %s229
      %p238 = scmp.eq.s32.totalorder %s29, 0
      %p239 = por %p237, %p238
      %p240 = scmp.ne.s32.totalorder %s228, %s229
      %p241 = scmp.eq.s32.totalorder %s30, 1
      %p242 = por %p240, %p241
      %p244 = scmp.ne.s32.totalorder %s229, %s243
      %p245 = scmp.eq.s32.totalorder %s30, 0
      %p246 = por %p244, %p245
      %s248 = sadd.s32 %s247, 1
      %p251 = scmp.eq.s32.totalorder %s24, 1
      %p252 = scmp.ne.s32.totalorder %s247, %s249
      %p253 = scmp.eq.s32.totalorder %s24, 0
      %p254 = por %p252, %p253
      %p255 = scmp.ne.s32.totalorder %s247, %s249
      %p256 = scmp.eq.s32.totalorder %s29, 1
      %p257 = por %p255, %p256
      %p258 = scmp.ne.s32.totalorder %s249, %s250
      %p259 = scmp.eq.s32.totalorder %s29, 0
      %p260 = por %p258, %p259
      %p261 = scmp.ne.s32.totalorder %s249, %s250
      %p262 = scmp.eq.s32.totalorder %s30, 1
      %p263 = por %p261, %p262
      %p265 = scmp.ne.s32.totalorder %s250, %s264
      %p266 = scmp.eq.s32.totalorder %s30, 0
      %p267 = por %p265, %p266
      %s268 = ssub.s32 %s24, %s31
      %p269 = scmp.eq.s32.totalorder %s268, 0
      %s271 = sadd.s32 %s270, 1
      %s272 = scalar_select %p269, %s270, %s271
      %p275 = pneg %p269
      %p276 = scmp.eq.s32.totalorder %s24, 1
      %p277 = por %p275, %p276
      %p278 = scmp.ne.s32.totalorder %s270, %s273
      %p279 = scmp.eq.s32.totalorder %s24, 0
      %p280 = por %p278, %p279
      %p281 = scmp.ne.s32.totalorder %s270, %s273
      %p282 = scmp.eq.s32.totalorder %s29, 1
      %p283 = por %p281, %p282
      %p284 = scmp.ne.s32.totalorder %s273, %s274
      %p285 = scmp.eq.s32.totalorder %s29, 0
      %p286 = por %p284, %p285
      %p287 = scmp.ne.s32.totalorder %s273, %s274
      %p288 = scmp.eq.s32.totalorder %s30, 1
      %p289 = por %p287, %p288
      %p291 = scmp.ne.s32.totalorder %s274, %s290
      %p292 = scmp.eq.s32.totalorder %s30, 0
      %p293 = por %p291, %p292
      %p294 = scmp.le.s32.totalorder 1, %s24
      %p295 = scmp.lt.s32.totalorder %s24, 3
      %p296 = pnand %p294, %p295
      %p297 = pneg %p296
      // Predicated region
      $region9: #{tpu_custom_call.1} parent=5 // pred_check
        _
      $region10: #{tpu_custom_call.1} parent=5 // pred_check_branch
        %299 = sbr.rel (%p296) target = $region12
      $region11: #{tpu_custom_call.1} parent=5 // pred_region
        %s300 = ssub.s32 %s24, 1
        // Predicated region
        $region13: #{tpu_custom_call.1} parent=11 // pred_check
          %p301 = pneg %p71
        $region14: #{tpu_custom_call.1} parent=11 // pred_check_branch
          %303 = sbr.rel (%p301) target = $region16
        $region15: #{tpu_custom_call.1} parent=11 // pred_region
          %s305 = ssub.s32 8192, 8192
          %306 = vsyncadd [#allocation7], %s305
          %s307 = sshll.u32 [#allocation6], 4
          %s308 = int_to_ptr.vmem [resolvable:$true] %s307
          %313 = dma.hbm_to_vmem [thread:$0]  %s1, 8192, %s308, [#allocation7], 256, 256, 16
        $region16: #{tpu_custom_call.1} parent=11 // pred_fallthru
          _
        // Predicated region
        $region17: #{tpu_custom_call.1} parent=11 // pred_check
          %p314 = pneg %p92
        $region18: #{tpu_custom_call.1} parent=11 // pred_check_branch
          %316 = sbr.rel (%p314) target = $region20
        $region19: #{tpu_custom_call.1} parent=11 // pred_region
          %s318 = ssub.s32 512, 512
          %319 = vsyncadd [#allocation7], %s318
          %s320 = sshll.u32 [#allocation8], 4
          %s321 = int_to_ptr.vmem [resolvable:$true] %s320
          %326 = dma.hbm_to_vmem [thread:$0]  %s2, 512, %s321, [#allocation7], 256, 256, 16
        $region20: #{tpu_custom_call.1} parent=11 // pred_fallthru
          _
        // Predicated region
        $region21: #{tpu_custom_call.1} parent=11 // pred_check
          %p327 = pneg %p113
        $region22: #{tpu_custom_call.1} parent=11 // pred_check_branch
          %329 = sbr.rel (%p327) target = $region24
        $region23: #{tpu_custom_call.1} parent=11 // pred_region
          _
        $region24: #{tpu_custom_call.1} parent=11 // pred_fallthru
          _
        // Predicated region
        $region25: #{tpu_custom_call.1} parent=11 // pred_check
          %p330 = pneg %p134
        $region26: #{tpu_custom_call.1} parent=11 // pred_check_branch
          %332 = sbr.rel (%p330) target = $region28
        $region27: #{tpu_custom_call.1} parent=11 // pred_region
          _
        $region28: #{tpu_custom_call.1} parent=11 // pred_fallthru
          _
        // Predicated region
        $region29: #{tpu_custom_call.1} parent=11 // pred_check
          %p333 = pneg %p155
        $region30: #{tpu_custom_call.1} parent=11 // pred_check_branch
          %335 = sbr.rel (%p333) target = $region32
        $region31: #{tpu_custom_call.1} parent=11 // pred_region
          _
        $region32: #{tpu_custom_call.1} parent=11 // pred_fallthru
          _
        // Predicated region
        $region33: #{tpu_custom_call.1} parent=11 // pred_check
          %p336 = pneg %p176
        $region34: #{tpu_custom_call.1} parent=11 // pred_check_branch
          %338 = sbr.rel (%p336) target = $region36
        $region35: #{tpu_custom_call.1} parent=11 // pred_region
          _
        $region36: #{tpu_custom_call.1} parent=11 // pred_fallthru
          _
        // Predicated region
        $region37: #{tpu_custom_call.1} parent=11 // pred_check
          %p339 = pneg %p197
        $region38: #{tpu_custom_call.1} parent=11 // pred_check_branch
          %341 = sbr.rel (%p339) target = $region40
        $region39: #{tpu_custom_call.1} parent=11 // pred_region
          _
        $region40: #{tpu_custom_call.1} parent=11 // pred_fallthru
          _
        // Predicated region
        $region41: #{tpu_custom_call.1} parent=11 // pred_check
          %p342 = pneg %p218
        $region42: #{tpu_custom_call.1} parent=11 // pred_check_branch
          %344 = sbr.rel (%p342) target = $region44
        $region43: #{tpu_custom_call.1} parent=11 // pred_region
          _
        $region44: #{tpu_custom_call.1} parent=11 // pred_fallthru
          _
        // Predicated region
        $region45: #{tpu_custom_call.1} parent=11 // pred_check
          %p345 = pneg %p239
        $region46: #{tpu_custom_call.1} parent=11 // pred_check_branch
          %347 = sbr.rel (%p345) target = $region48
        $region47: #{tpu_custom_call.1} parent=11 // pred_region
          _
        $region48: #{tpu_custom_call.1} parent=11 // pred_fallthru
          _
        // Predicated region
        $region49: #{tpu_custom_call.1} parent=11 // pred_check
          %p348 = pneg %p260
        $region50: #{tpu_custom_call.1} parent=11 // pred_check_branch
          %350 = sbr.rel (%p348) target = $region52
        $region51: #{tpu_custom_call.1} parent=11 // pred_region
          _
        $region52: #{tpu_custom_call.1} parent=11 // pred_fallthru
          _
      $region12: #{tpu_custom_call.1} parent=5 // pred_fallthru
        _
      %p351 = scmp.lt.s32.totalorder %s24, 2
      // Predicated region
      $region53: #{tpu_custom_call.1} parent=5 // pred_check
        %p352 = pneg %p351
      $region54: #{tpu_custom_call.1} parent=5 // pred_check_branch
        %354 = sbr.rel (%p352) target = $region56
      $region55: #{tpu_custom_call.1} parent=5 // pred_region
        // Predicated region
        $region57: #{tpu_custom_call.1} parent=55 // pred_check
          %p355 = pneg %p44
        $region58: #{tpu_custom_call.1} parent=55 // pred_check_branch
          %357 = sbr.rel (%p355) target = $region60
        $region59: #{tpu_custom_call.1} parent=55 // pred_region
          %s358 = sand.u32 %s34, 1
          %s359 = scalar_lea.sflag [#allocation4], %s358
          %s360 = sand.u32 %s34, 1
          %s361 = smul.addr %s360, 8
          %s362 = scalar_lea.vmem [#allocation3], %s361
          %s364 = ssub.s32 128, 128
          %365 = vsyncadd %s359, %s364
          %s366 = smul.addr %s24, 2
          %s367 = smul.addr %s366, 64
          %s368 = scalar_lea.hbm %s0, %s367
          %s370 = sshll.u32 %s362, 4
          %s371 = int_to_ptr.vmem [resolvable:$true] %s370
          %373 = dma.hbm_to_vmem [thread:$0]  %s368, 128, %s371, %s359
        $region60: #{tpu_custom_call.1} parent=55 // pred_fallthru
          _
      $region56: #{tpu_custom_call.1} parent=5 // pred_fallthru
        _
      %p374 = scmp.le.s32.totalorder 1, %s24
      %p375 = scmp.lt.s32.totalorder %s24, 3
      %p376 = pnand %p374, %p375
      %p377 = pneg %p376
      // Predicated region
      $region61: #{tpu_custom_call.1} parent=5 // pred_check
        _
      $region62: #{tpu_custom_call.1} parent=5 // pred_check_branch
        %379 = sbr.rel (%p376) target = $region64
      $region63: #{tpu_custom_call.1} parent=5 // pred_region
        %s380 = ssub.s32 %s24, 1
        %s381 = sand.u32 %s37, 1
        %s382 = scalar_lea.sflag [#allocation4], %s381
        %s383 = sand.u32 %s37, 1
        %s384 = smul.addr %s383, 8
        %s385 = scalar_lea.vmem [#allocation3], %s384
        // Predicated region
        $region65: #{tpu_custom_call.1} parent=63 // pred_check
          %p386 = pneg %p50
        $region66: #{tpu_custom_call.1} parent=63 // pred_check_branch
          %388 = sbr.rel (%p386) target = $region68
        $region67: #{tpu_custom_call.1} parent=63 // pred_region
          %389 = dma.done %s382, 128
        $region68: #{tpu_custom_call.1} parent=63 // pred_fallthru
          _
        // Predicated region
        $region69: #{tpu_custom_call.1} parent=63 // pred_check
          %p390 = pneg %p71
        $region70: #{tpu_custom_call.1} parent=63 // pred_check_branch
          %392 = sbr.rel (%p390) target = $region72
        $region71: #{tpu_custom_call.1} parent=63 // pred_region
          %393 = dma.done [#allocation7], 8192
        $region72: #{tpu_custom_call.1} parent=63 // pred_fallthru
          _
        // Predicated region
        $region73: #{tpu_custom_call.1} parent=63 // pred_check
          %p394 = pneg %p92
        $region74: #{tpu_custom_call.1} parent=63 // pred_check_branch
          %396 = sbr.rel (%p394) target = $region76
        $region75: #{tpu_custom_call.1} parent=63 // pred_region
          %397 = dma.done [#allocation7], 512
        $region76: #{tpu_custom_call.1} parent=63 // pred_fallthru
          _
        %s398 = sand.u32 %s37, 1
        %s399 = scalar_lea.sflag [#allocation4], %s398
        %s400 = sand.u32 %s37, 1
        %s401 = smul.addr %s400, 8
        %s402 = scalar_lea.vmem [#allocation3], %s401
        %p403 = pneg %p50
        %p404 = pneg %p47
        %p405 = pneg %p71
        %p406 = pneg %p68
        %p407 = pneg %p92
        %p408 = pneg %p89
        %p409 = pneg %p113
        %p410 = pneg %p110
        %p411 = pneg %p134
        %p412 = pneg %p131
        %p413 = pneg %p155
        %p414 = pneg %p152
        %p415 = pneg %p176
        %p416 = pneg %p173
        %p417 = pneg %p197
        %p418 = pneg %p194
        %p419 = pneg %p218
        %p420 = pneg %p215
        %p421 = pneg %p239
        %p422 = pneg %p236
        %p423 = pneg %p260
        %p424 = pneg %p257
        %p425 = pneg %p286
        %p426 = pneg %p283
        %s427 = sand.u32 %s273, 1
        %s428 = scalar_lea.sflag [#allocation5], %s427
        %s429 = sand.u32 %s273, 1
        %s430 = smul.addr %s429, 8
        %s431 = scalar_lea.vmem [#allocation9], %s430
        %v432 = vld [vmem:[%s385] sm:$0xff]
        %v433 = vld [vmem:[#allocation6] sm:$0xff]
        %v434 = vld [vmem:[#allocation6 + $0x8] sm:$0xff]
        %v435 = vld [vmem:[#allocation6 + $0x10] sm:$0xff]
        %v436 = vld [vmem:[#allocation6 + $0x18] sm:$0xff]
        %v437 = vld [vmem:[#allocation6 + $0x20] sm:$0xff]
        %v438 = vld [vmem:[#allocation6 + $0x28] sm:$0xff]
        %v439 = vld [vmem:[#allocation6 + $0x30] sm:$0xff]
        %v440 = vld [vmem:[#allocation6 + $0x38] sm:$0xff]
        %v441 = vld [vmem:[#allocation6 + $0x40] sm:$0xff]
        %v442 = vld [vmem:[#allocation6 + $0x48] sm:$0xff]
        %v443 = vld [vmem:[#allocation6 + $0x50] sm:$0xff]
        %v444 = vld [vmem:[#allocation6 + $0x58] sm:$0xff]
        %v445 = vld [vmem:[#allocation6 + $0x60] sm:$0xff]
        %v446 = vld [vmem:[#allocation6 + $0x68] sm:$0xff]
        %v447 = vld [vmem:[#allocation6 + $0x70] sm:$0xff]
        %v448 = vld [vmem:[#allocation6 + $0x78] sm:$0xff]
        %v449 = vld [vmem:[#allocation6 + $0x80] sm:$0xff]
        %v450 = vld [vmem:[#allocation6 + $0x88] sm:$0xff]
        %v451 = vld [vmem:[#allocation6 + $0x90] sm:$0xff]
        %v452 = vld [vmem:[#allocation6 + $0x98] sm:$0xff]
        %v453 = vld [vmem:[#allocation6 + $0xa0] sm:$0xff]
        %v454 = vld [vmem:[#allocation6 + $0xa8] sm:$0xff]
        %v455 = vld [vmem:[#allocation6 + $0xb0] sm:$0xff]
        %v456 = vld [vmem:[#allocation6 + $0xb8] sm:$0xff]
        %v457 = vld [vmem:[#allocation6 + $0xc0] sm:$0xff]
        %v458 = vld [vmem:[#allocation6 + $0xc8] sm:$0xff]
        %v459 = vld [vmem:[#allocation6 + $0xd0] sm:$0xff]
        %v460 = vld [vmem:[#allocation6 + $0xd8] sm:$0xff]
        %v461 = vld [vmem:[#allocation6 + $0xe0] sm:$0xff]
        %v462 = vld [vmem:[#allocation6 + $0xe8] sm:$0xff]
        %v463 = vld [vmem:[#allocation6 + $0xf0] sm:$0xff]
        %v464 = vld [vmem:[#allocation6 + $0xf8] sm:$0xff]
        %v465 = vld [vmem:[#allocation6 + $0x100] sm:$0xff]
        %v466 = vld [vmem:[#allocation6 + $0x108] sm:$0xff]
        %v467 = vld [vmem:[#allocation6 + $0x110] sm:$0xff]
        %v468 = vld [vmem:[#allocation6 + $0x118] sm:$0xff]
        %v469 = vld [vmem:[#allocation6 + $0x120] sm:$0xff]
        %v470 = vld [vmem:[#allocation6 + $0x128] sm:$0xff]
        %v471 = vld [vmem:[#allocation6 + $0x130] sm:$0xff]
        %v472 = vld [vmem:[#allocation6 + $0x138] sm:$0xff]
        %v473 = vld [vmem:[#allocation6 + $0x140] sm:$0xff]
        %v474 = vld [vmem:[#allocation6 + $0x148] sm:$0xff]
        %v475 = vld [vmem:[#allocation6 + $0x150] sm:$0xff]
        %v476 = vld [vmem:[#allocation6 + $0x158] sm:$0xff]
        %v477 = vld [vmem:[#allocation6 + $0x160] sm:$0xff]
        %v478 = vld [vmem:[#allocation6 + $0x168] sm:$0xff]
        %v479 = vld [vmem:[#allocation6 + $0x170] sm:$0xff]
        %v480 = vld [vmem:[#allocation6 + $0x178] sm:$0xff]
        %v481 = vld [vmem:[#allocation6 + $0x180] sm:$0xff]
        %v482 = vld [vmem:[#allocation6 + $0x188] sm:$0xff]
        %v483 = vld [vmem:[#allocation6 + $0x190] sm:$0xff]
        %v484 = vld [vmem:[#allocation6 + $0x198] sm:$0xff]
        %v485 = vld [vmem:[#allocation6 + $0x1a0] sm:$0xff]
        %v486 = vld [vmem:[#allocation6 + $0x1a8] sm:$0xff]
        %v487 = vld [vmem:[#allocation6 + $0x1b0] sm:$0xff]
        %v488 = vld [vmem:[#allocation6 + $0x1b8] sm:$0xff]
        %v489 = vld [vmem:[#allocation6 + $0x1c0] sm:$0xff]
        %v490 = vld [vmem:[#allocation6 + $0x1c8] sm:$0xff]
        %v491 = vld [vmem:[#allocation6 + $0x1d0] sm:$0xff]
        %v492 = vld [vmem:[#allocation6 + $0x1d8] sm:$0xff]
        %v493 = vld [vmem:[#allocation6 + $0x1e0] sm:$0xff]
        %v494 = vld [vmem:[#allocation6 + $0x1e8] sm:$0xff]
        %v495 = vld [vmem:[#allocation6 + $0x1f0] sm:$0xff]
        %v496 = vld [vmem:[#allocation6 + $0x1f8] sm:$0xff]
        %v498 = vcombine.high %v432, %v432
        %500 = vmatprep.subr.mxu0 %v434
        %501 = vmatpush1.msra.mxu0 %v433
        %502 = vmatprep.subr.mxu0 %v436
        %503 = vmatpush1.msra.mxu0 %v435
        %504 = vmatprep.subr.mxu0 %v438
        %505 = vmatpush1.msra.mxu0 %v437
        %506 = vmatprep.subr.mxu0 %v440
        %507 = vmatpush1.msra.mxu0 %v439
        %508 = vmatprep.subr.mxu0 %v442
        %509 = vmatpush1.msra.mxu0 %v441
        %510 = vmatprep.subr.mxu0 %v444
        %511 = vmatpush1.msra.mxu0 %v443
        %512 = vmatprep.subr.mxu0 %v446
        %513 = vmatpush1.msra.mxu0 %v445
        %514 = vmatprep.subr.mxu0 %v448
        %515 = vmatpush1.msra.mxu0 %v447
        %516 = vmatprep.subr.mxu0 %v450
        %517 = vmatpush1.msra.mxu0 %v449
        %518 = vmatprep.subr.mxu0 %v452
        %519 = vmatpush1.msra.mxu0 %v451
        %520 = vmatprep.subr.mxu0 %v454
        %521 = vmatpush1.msra.mxu0 %v453
        %522 = vmatprep.subr.mxu0 %v456
        %523 = vmatpush1.msra.mxu0 %v455
        %524 = vmatprep.subr.mxu0 %v458
        %525 = vmatpush1.msra.mxu0 %v457
        %526 = vmatprep.subr.mxu0 %v460
        %527 = vmatpush1.msra.mxu0 %v459
        %528 = vmatprep.subr.mxu0 %v462
        %529 = vmatpush1.msra.mxu0 %v461
        %530 = vmatprep.subr.mxu0 %v464
        %531 = vmatpush1.msra.mxu0 %v463
        %532 = vmatprep.subr.mxu0 %v466
        %533 = vmatpush1.msra.mxu0 %v465
        %534 = vmatprep.subr.mxu0 %v468
        %535 = vmatpush1.msra.mxu0 %v467
        %536 = vmatprep.subr.mxu0 %v470
        %537 = vmatpush1.msra.mxu0 %v469
        %538 = vmatprep.subr.mxu0 %v472
        %539 = vmatpush1.msra.mxu0 %v471
        %540 = vmatprep.subr.mxu0 %v474
        %541 = vmatpush1.msra.mxu0 %v473
        %542 = vmatprep.subr.mxu0 %v476
        %543 = vmatpush1.msra.mxu0 %v475
        %544 = vmatprep.subr.mxu0 %v478
        %545 = vmatpush1.msra.mxu0 %v477
        %546 = vmatprep.subr.mxu0 %v480
        %547 = vmatpush1.msra.mxu0 %v479
        %548 = vmatprep.subr.mxu0 %v482
        %549 = vmatpush1.msra.mxu0 %v481
        %550 = vmatprep.subr.mxu0 %v484
        %551 = vmatpush1.msra.mxu0 %v483
        %552 = vmatprep.subr.mxu0 %v486
        %553 = vmatpush1.msra.mxu0 %v485
        %554 = vmatprep.subr.mxu0 %v488
        %555 = vmatpush1.msra.mxu0 %v487
        %556 = vmatprep.subr.mxu0 %v490
        %557 = vmatpush1.msra.mxu0 %v489
        %558 = vmatprep.subr.mxu0 %v492
        %559 = vmatpush1.msra.mxu0 %v491
        %560 = vmatprep.subr.mxu0 %v494
        %561 = vmatpush1.msra.mxu0 %v493
        %562 = vmatprep.subr.mxu0 %v496
        %563 = vmatpush1.msra.mxu0 %v495
        %564 = vmatprep.mubr.f32.mxu0 %v498
        %565 = vmatmul.mubr.f32.gmra.mrb[0].mxu0 %v432
        %v566 = vpop.f32.mrb[0].mxu0
        %v567 = vadd.f32 0.0, %v566
        %v568 = vpop.f32.mrb[0].mxu0
        %v569 = vadd.f32 0.0, %v568
        %570 = vdwg.mxu0
        %v573 = vcombine.low %v567, %v569
        %v575 = vsub.f32 %v432, %v573
        %v576 = vmul.f32 %v575, %v575
        %v578 = vcombine.high %v576, %v576
        %580 = vmatprep.subr.mxu0 %v434
        %581 = vmatpush1.msra.mxu0 %v433
        %582 = vmatprep.subr.mxu0 %v436
        %583 = vmatpush1.msra.mxu0 %v435
        %584 = vmatprep.subr.mxu0 %v438
        %585 = vmatpush1.msra.mxu0 %v437
        %586 = vmatprep.subr.mxu0 %v440
        %587 = vmatpush1.msra.mxu0 %v439
        %588 = vmatprep.subr.mxu0 %v442
        %589 = vmatpush1.msra.mxu0 %v441
        %590 = vmatprep.subr.mxu0 %v444
        %591 = vmatpush1.msra.mxu0 %v443
        %592 = vmatprep.subr.mxu0 %v446
        %593 = vmatpush1.msra.mxu0 %v445
        %594 = vmatprep.subr.mxu0 %v448
        %595 = vmatpush1.msra.mxu0 %v447
        %596 = vmatprep.subr.mxu0 %v450
        %597 = vmatpush1.msra.mxu0 %v449
        %598 = vmatprep.subr.mxu0 %v452
        %599 = vmatpush1.msra.mxu0 %v451
        %600 = vmatprep.subr.mxu0 %v454
        %601 = vmatpush1.msra.mxu0 %v453
        %602 = vmatprep.subr.mxu0 %v456
        %603 = vmatpush1.msra.mxu0 %v455
        %604 = vmatprep.subr.mxu0 %v458
        %605 = vmatpush1.msra.mxu0 %v457
        %606 = vmatprep.subr.mxu0 %v460
        %607 = vmatpush1.msra.mxu0 %v459
        %608 = vmatprep.subr.mxu0 %v462
        %609 = vmatpush1.msra.mxu0 %v461
        %610 = vmatprep.subr.mxu0 %v464
        %611 = vmatpush1.msra.mxu0 %v463
        %612 = vmatprep.subr.mxu0 %v466
        %613 = vmatpush1.msra.mxu0 %v465
        %614 = vmatprep.subr.mxu0 %v468
        %615 = vmatpush1.msra.mxu0 %v467
        %616 = vmatprep.subr.mxu0 %v470
        %617 = vmatpush1.msra.mxu0 %v469
        %618 = vmatprep.subr.mxu0 %v472
        %619 = vmatpush1.msra.mxu0 %v471
        %620 = vmatprep.subr.mxu0 %v474
        %621 = vmatpush1.msra.mxu0 %v473
        %622 = vmatprep.subr.mxu0 %v476
        %623 = vmatpush1.msra.mxu0 %v475
        %624 = vmatprep.subr.mxu0 %v478
        %625 = vmatpush1.msra.mxu0 %v477
        %626 = vmatprep.subr.mxu0 %v480
        %627 = vmatpush1.msra.mxu0 %v479
        %628 = vmatprep.subr.mxu0 %v482
        %629 = vmatpush1.msra.mxu0 %v481
        %630 = vmatprep.subr.mxu0 %v484
        %631 = vmatpush1.msra.mxu0 %v483
        %632 = vmatprep.subr.mxu0 %v486
        %633 = vmatpush1.msra.mxu0 %v485
        %634 = vmatprep.subr.mxu0 %v488
        %635 = vmatpush1.msra.mxu0 %v487
        %636 = vmatprep.subr.mxu0 %v490
        %637 = vmatpush1.msra.mxu0 %v489
        %638 = vmatprep.subr.mxu0 %v492
        %639 = vmatpush1.msra.mxu0 %v491
        %640 = vmatprep.subr.mxu0 %v494
        %641 = vmatpush1.msra.mxu0 %v493
        %642 = vmatprep.subr.mxu0 %v496
        %643 = vmatpush1.msra.mxu0 %v495
        %644 = vmatprep.mubr.f32.mxu0 %v578
        %645 = vmatmul.mubr.f32.gmra.mrb[0].mxu0 %v576
        %v646 = vpop.f32.mrb[0].mxu0
        %v647 = vadd.f32 1e-05, %v646
        %v648 = vpop.f32.mrb[0].mxu0
        %v649 = vadd.f32 1e-05, %v648
        %650 = vdwg.mxu0
        %v651 = vrsqrt.pop %v647
        %v652 = vrsqrt.pop %v649
        %v655 = vcombine.low %v651, %v652
        %v657 = vmul.f32 %v575, %v655
        %v658 = vld [vmem:[%s3] sm:$0x3]
        %v660 = vlaneseq
        %v661 = vshrl.u32 %v660, 7
        %v662 = vsub.s32 0, %v661
        %v663 = vrot.slane %v658, %v662
        %v664 = vlaneseq
        %v665 = vshrl.u32 %v664, 7
        %v666 = vsub.s32 1, %v665
        %v667 = vrot.slane %v658, %v666
        %v668 = vcombine.low %v663, %v667
        %v670 = vmul.f32 %v657, %v668
        %v671 = vld [vmem:[%s4] sm:$0x3]
        %v673 = vlaneseq
        %v674 = vshrl.u32 %v673, 7
        %v675 = vsub.s32 0, %v674
        %v676 = vrot.slane %v671, %v675
        %v677 = vlaneseq
        %v678 = vshrl.u32 %v677, 7
        %v679 = vsub.s32 1, %v678
        %v680 = vrot.slane %v671, %v679
        %v681 = vcombine.low %v676, %v680
        %v683 = vadd.f32 %v670, %v681
        %v684 = vmul.f32 %v683, 0.5
        %v685 = vmul.f32 %v683, 0.70710677
        %vm686 = vcmp.ge.f32.partialorder %v685, 0.0
        %v687 = vsel %vm686, 1.0, -1.0
        %v688 = vand.u32 2147483647, %v685
        %v689 = vmul.f32 %v688, 0.3275911
        %v690 = vadd.f32 %v689, 1.0
        %v691 = vrcp.pop %v690
        %v692 = vmul.f32 1.0, %v691
        %v693 = vmul.f32 %v692, 1.0614054
        %v694 = vadd.f32 %v693, -1.4531521
        %v695 = vmul.f32 %v694, %v692
        %v696 = vadd.f32 %v695, 1.4214138
        %v697 = vmul.f32 %v696, %v692
        %v698 = vadd.f32 %v697, -0.28449672
        %v699 = vmul.f32 %v698, %v692
        %v700 = vadd.f32 %v699, 0.2548296
        %v701 = vmul.f32 %v700, %v692
        %v702 = vsub.f32 0.0, %v688
        %v703 = vmul.f32 %v702, %v688
        %v704 = vmul.f32 %v703, 1.442695
        %v705 = vpow.pop %v704
        %v706 = vmul.f32 %v701, %v705
        %v707 = vsub.f32 1.0, %v706
        %v708 = vmul.f32 %v687, %v707
        %v709 = vadd.f32 %v708, 1.0
        %v710 = vmul.f32 %v684, %v709
        %v712 = vcombine.high %v710, %v710
        %714 = vrot.lane.b32.xlu0 %v710, 17
        %v715 = vpop.permute.xlu0 %714
        %716 = vrot.lane.b32.xlu0 %v712, 17
        %v717 = vpop.permute.xlu0 %716
        %v718 = vlaneseq
        %v719 = vand.u32 %v718, 127
        %vm720 = vcmp.lt.s32.totalorder %v719, 17
        %v721 = vsel %vm720, %v715, %v717
        %v722 = vsel %vm720, %v717, %v715
        %v723 = vld [vmem:[#allocation8] ss:$8 sm:$0x3]
        %v725 = vlaneseq
        %v726 = vshrl.u32 %v725, 7
        %v727 = vsub.s32 0, %v726
        %v728 = vrot.slane %v723, %v727
        %v729 = vlaneseq
        %v730 = vshrl.u32 %v729, 7
        %v731 = vsub.s32 1, %v730
        %v732 = vrot.slane %v723, %v731
        %v735 = vmul.f32 %v722, %v728
        %v736 = vmul.f32 %v721, %v732
        %737 = vst [vmem:[#allocation2] sm:$0xf] %v735
        %738 = vst [vmem:[#allocation2 + $0x8] sm:$0xf] %v736
        %739 = vrot.lane.b32.xlu0 %v710, 16
        %v740 = vpop.permute.xlu0 %739
        %741 = vrot.lane.b32.xlu0 %v712, 16
        %v742 = vpop.permute.xlu0 %741
        %vm743 = vcmp.lt.s32.totalorder %v719, 16
        %v744 = vsel %vm743, %v740, %v742
        %v745 = vsel %vm743, %v742, %v740
        %s746 = scalar_lea.vmem [#allocation8], 1
        %v747 = vld [vmem:[%s746] ss:$8 sm:$0x3]
        %v749 = vlaneseq
        %v750 = vshrl.u32 %v749, 7
        %v751 = vsub.s32 0, %v750
        %v752 = vrot.slane %v747, %v751
        %v753 = vlaneseq
        %v754 = vshrl.u32 %v753, 7
        %v755 = vsub.s32 1, %v754
        %v756 = vrot.slane %v747, %v755
        %v759 = vmul.f32 %v745, %v752
        %v760 = vmul.f32 %v744, %v756
        %v763 = vrot.slane %v759, 4
        %v764 = vrot.slane %v760, 4
        %767 = vst [vmem:[#allocation2] sm:$0xf0] %v763
        %768 = vst [vmem:[#allocation2 + $0x8] sm:$0xf0] %v764
        %769 = vrot.lane.b32.xlu0 %v710, 15
        %v770 = vpop.permute.xlu0 %769
        %771 = vrot.lane.b32.xlu0 %v712, 15
        %v772 = vpop.permute.xlu0 %771
        %vm773 = vcmp.lt.s32.totalorder %v719, 15
        %v774 = vsel %vm773, %v770, %v772
        %v775 = vsel %vm773, %v772, %v770
        %s776 = scalar_lea.vmem [#allocation8], 2
        %v777 = vld [vmem:[%s776] ss:$8 sm:$0x3]
        %v779 = vlaneseq
        %v780 = vshrl.u32 %v779, 7
        %v781 = vsub.s32 0, %v780
        %v782 = vrot.slane %v777, %v781
        %v783 = vlaneseq
        %v784 = vshrl.u32 %v783, 7
        %v785 = vsub.s32 1, %v784
        %v786 = vrot.slane %v777, %v785
        %v789 = vmul.f32 %v775, %v782
        %v790 = vmul.f32 %v774, %v786
        %791 = vst [vmem:[#allocation2 + $0x10] sm:$0xf] %v789
        %792 = vst [vmem:[#allocation2 + $0x18] sm:$0xf] %v790
        %793 = vrot.lane.b32.xlu0 %v710, 1
        %v794 = vpop.permute.xlu0 %793
        %795 = vrot.lane.b32.xlu0 %v712, 1
        %v796 = vpop.permute.xlu0 %795
        %vm797 = vcmp.lt.s32.totalorder %v719, 1
        %v798 = vsel %vm797, %v794, %v796
        %v799 = vsel %vm797, %v796, %v794
        %s800 = scalar_lea.vmem [#allocation8], 3
        %v801 = vld [vmem:[%s800] ss:$8 sm:$0x3]
        %v803 = vlaneseq
        %v804 = vshrl.u32 %v803, 7
        %v805 = vsub.s32 0, %v804
        %v806 = vrot.slane %v801, %v805
        %v807 = vlaneseq
        %v808 = vshrl.u32 %v807, 7
        %v809 = vsub.s32 1, %v808
        %v810 = vrot.slane %v801, %v809
        %v813 = vmul.f32 %v799, %v806
        %v814 = vmul.f32 %v798, %v810
        %v817 = vrot.slane %v813, 4
        %v818 = vrot.slane %v814, 4
        %821 = vst [vmem:[#allocation2 + $0x10] sm:$0xf0] %v817
        %822 = vst [vmem:[#allocation2 + $0x18] sm:$0xf0] %v818
        %s823 = scalar_lea.vmem [#allocation8], 4
        %v824 = vld [vmem:[%s823] ss:$8 sm:$0x3]
        %v826 = vlaneseq
        %v827 = vshrl.u32 %v826, 7
        %v828 = vsub.s32 0, %v827
        %v829 = vrot.slane %v824, %v828
        %v830 = vlaneseq
        %v831 = vshrl.u32 %v830, 7
        %v832 = vsub.s32 1, %v831
        %v833 = vrot.slane %v824, %v832
        %v834 = vcombine.low %v829, %v833
        %v836 = vmul.f32 %v710, %v834
        %v838 = vcombine.high %v836, %v836
        %840 = vst [vmem:[#allocation2 + $0x20] sm:$0xf] %v836
        %841 = vst [vmem:[#allocation2 + $0x28] sm:$0xf] %v838
        %842 = vrot.lane.b32.xlu0 %v710, 127
        %v843 = vpop.permute.xlu0 %842
        %844 = vrot.lane.b32.xlu0 %v712, 127
        %v845 = vpop.permute.xlu0 %844
        %vm846 = vcmp.lt.s32.totalorder %v719, 127
        %v847 = vsel %vm846, %v843, %v845
        %v848 = vsel %vm846, %v845, %v843
        %s849 = scalar_lea.vmem [#allocation8], 5
        %v850 = vld [vmem:[%s849] ss:$8 sm:$0x3]
        %v852 = vlaneseq
        %v853 = vshrl.u32 %v852, 7
        %v854 = vsub.s32 0, %v853
        %v855 = vrot.slane %v850, %v854
        %v856 = vlaneseq
        %v857 = vshrl.u32 %v856, 7
        %v858 = vsub.s32 1, %v857
        %v859 = vrot.slane %v850, %v858
        %v862 = vmul.f32 %v847, %v855
        %v863 = vmul.f32 %v848, %v859
        %v866 = vrot.slane %v862, 4
        %v867 = vrot.slane %v863, 4
        %870 = vst [vmem:[#allocation2 + $0x20] sm:$0xf0] %v866
        %871 = vst [vmem:[#allocation2 + $0x28] sm:$0xf0] %v867
        %872 = vrot.lane.b32.xlu0 %v710, 113
        %v873 = vpop.permute.xlu0 %872
        %874 = vrot.lane.b32.xlu0 %v712, 113
        %v875 = vpop.permute.xlu0 %874
        %vm876 = vcmp.lt.s32.totalorder %v719, 113
        %v877 = vsel %vm876, %v873, %v875
        %v878 = vsel %vm876, %v875, %v873
        %s879 = scalar_lea.vmem [#allocation8], 6
        %v880 = vld [vmem:[%s879] ss:$8 sm:$0x3]
        %v882 = vlaneseq
        %v883 = vshrl.u32 %v882, 7
        %v884 = vsub.s32 0, %v883
        %v885 = vrot.slane %v880, %v884
        %v886 = vlaneseq
        %v887 = vshrl.u32 %v886, 7
        %v888 = vsub.s32 1, %v887
        %v889 = vrot.slane %v880, %v888
        %v892 = vmul.f32 %v877, %v885
        %v893 = vmul.f32 %v878, %v889
        %894 = vst [vmem:[#allocation2 + $0x30] sm:$0xf] %v892
        %895 = vst [vmem:[#allocation2 + $0x38] sm:$0xf] %v893
        %896 = vrot.lane.b32.xlu0 %v710, 112
        %v897 = vpop.permute.xlu0 %896
        %898 = vrot.lane.b32.xlu0 %v712, 112
        %v899 = vpop.permute.xlu0 %898
        %vm900 = vcmp.lt.s32.totalorder %v719, 112
        %v901 = vsel %vm900, %v897, %v899
        %v902 = vsel %vm900, %v899, %v897
        %s903 = scalar_lea.vmem [#allocation8], 7
        %v904 = vld [vmem:[%s903] ss:$8 sm:$0x3]
        %v906 = vlaneseq
        %v907 = vshrl.u32 %v906, 7
        %v908 = vsub.s32 0, %v907
        %v909 = vrot.slane %v904, %v908
        %v910 = vlaneseq
        %v911 = vshrl.u32 %v910, 7
        %v912 = vsub.s32 1, %v911
        %v913 = vrot.slane %v904, %v912
        %v916 = vmul.f32 %v901, %v909
        %v917 = vmul.f32 %v902, %v913
        %v920 = vrot.slane %v916, 4
        %v921 = vrot.slane %v917, 4
        %924 = vst [vmem:[#allocation2 + $0x30] sm:$0xf0] %v920
        %925 = vst [vmem:[#allocation2 + $0x38] sm:$0xf0] %v921
        %926 = vrot.lane.b32.xlu0 %v710, 111
        %v927 = vpop.permute.xlu0 %926
        %928 = vrot.lane.b32.xlu0 %v712, 111
        %v929 = vpop.permute.xlu0 %928
        %vm930 = vcmp.lt.s32.totalorder %v719, 111
        %v931 = vsel %vm930, %v927, %v929
        %v932 = vsel %vm930, %v929, %v927
        %s933 = scalar_lea.vmem [#allocation8], 16
        %v934 = vld [vmem:[%s933] ss:$8 sm:$0x3]
        %v936 = vlaneseq
        %v937 = vshrl.u32 %v936, 7
        %v938 = vsub.s32 0, %v937
        %v939 = vrot.slane %v934, %v938
        %v940 = vlaneseq
        %v941 = vshrl.u32 %v940, 7
        %v942 = vsub.s32 1, %v941
        %v943 = vrot.slane %v934, %v942
        %v946 = vmul.f32 %v931, %v939
        %v947 = vmul.f32 %v932, %v943
        %948 = vst [vmem:[#allocation2 + $0x40] sm:$0xf] %v946
        %949 = vst [vmem:[#allocation2 + $0x48] sm:$0xf] %v947
        %v950 = vld [vmem:[%s5] sm:$0xf]
        %v951 = vld [vmem:[#allocation2] sm:$0xff]
        %v952 = vld [vmem:[#allocation2 + $0x8] sm:$0xff]
        %v953 = vld [vmem:[#allocation2 + $0x10] sm:$0xff]
        %v954 = vld [vmem:[#allocation2 + $0x18] sm:$0xff]
        %v955 = vld [vmem:[#allocation2 + $0x20] sm:$0xff]
        %v956 = vld [vmem:[#allocation2 + $0x28] sm:$0xff]
        %v957 = vld [vmem:[#allocation2 + $0x30] sm:$0xff]
        %v958 = vld [vmem:[#allocation2 + $0x38] sm:$0xff]
        %v959 = vld [vmem:[#allocation2 + $0x40] sm:$0xf]
        %v960 = vld [vmem:[#allocation2 + $0x48] sm:$0xf]
        %v961 = vld [vmem:[%s6] sm:$0xf]
        %963 = vset.pattern.permute.xlu0 0
        %964 = vperm.xlu0 %963, %v961
        %v965 = vpop.permute.xlu0 %964
        %vm967 = vcmask 293888
        %v969 = vsel %vm967, %v950, 0
        %vm971 = vcmask 1043456
        %v973 = vsel %vm971, %v959, 0
        %v976 = vsel %vm971, %v960, 0
        %978 = vmatprep.subr.mxu0 %v952
        %979 = vmatpush1.msra.mxu0 %v951
        %980 = vmatprep.subr.mxu0 %v954
        %981 = vmatpush1.msra.mxu0 %v953
        %982 = vmatprep.subr.mxu0 %v956
        %983 = vmatpush1.msra.mxu0 %v955
        %984 = vmatprep.subr.mxu0 %v958
        %985 = vmatpush1.msra.mxu0 %v957
        %986 = vmatprep.subr.mxu0 %v976
        %987 = vmatpush1.msra.mxu0 %v973
        %988 = vmatprep.subr.mxu0 0.0
        %989 = vmatpush1.msra.mxu0 0.0
        %990 = vmatprep.subr.mxu0 0.0
        %991 = vmatpush1.msra.mxu0 0.0
        %992 = vmatprep.subr.mxu0 0.0
        %993 = vmatpush1.msra.mxu0 0.0
        %994 = vmatprep.subr.mxu0 0.0
        %995 = vmatpush1.msra.mxu0 0.0
        %996 = vmatprep.subr.mxu0 0.0
        %997 = vmatpush1.msra.mxu0 0.0
        %998 = vmatprep.subr.mxu0 0.0
        %999 = vmatpush1.msra.mxu0 0.0
        %1000 = vmatprep.subr.mxu0 0.0
        %1001 = vmatpush1.msra.mxu0 0.0
        %1002 = vmatprep.subr.mxu0 0.0
        %1003 = vmatpush1.msra.mxu0 0.0
        %1004 = vmatprep.subr.mxu0 0.0
        %1005 = vmatpush1.msra.mxu0 0.0
        %1006 = vmatprep.subr.mxu0 0.0
        %1007 = vmatpush1.msra.mxu0 0.0
        %1008 = vmatprep.subr.mxu0 0.0
        %1009 = vmatpush1.msra.mxu0 0.0
        %1010 = vmatprep.subr.mxu0 0.0
        %1011 = vmatpush1.msra.mxu0 0.0
        %1012 = vmatprep.subr.mxu0 0.0
        %1013 = vmatpush1.msra.mxu0 0.0
        %1014 = vmatprep.subr.mxu0 0.0
        %1015 = vmatpush1.msra.mxu0 0.0
        %1016 = vmatprep.subr.mxu0 0.0
        %1017 = vmatpush1.msra.mxu0 0.0
        %1018 = vmatprep.subr.mxu0 0.0
        %1019 = vmatpush1.msra.mxu0 0.0
        %1020 = vmatprep.subr.mxu0 0.0
        %1021 = vmatpush1.msra.mxu0 0.0
        %1022 = vmatprep.subr.mxu0 0.0
        %1023 = vmatpush1.msra.mxu0 0.0
        %1024 = vmatprep.subr.mxu0 0.0
        %1025 = vmatpush1.msra.mxu0 0.0
        %1026 = vmatprep.subr.mxu0 0.0
        %1027 = vmatpush1.msra.mxu0 0.0
        %1028 = vmatprep.subr.mxu0 0.0
        %1029 = vmatpush1.msra.mxu0 0.0
        %1030 = vmatprep.subr.mxu0 0.0
        %1031 = vmatpush1.msra.mxu0 0.0
        %1032 = vmatprep.subr.mxu0 0.0
        %1033 = vmatpush1.msra.mxu0 0.0
        %1034 = vmatprep.subr.mxu0 0.0
        %1035 = vmatpush1.msra.mxu0 0.0
        %1036 = vmatprep.subr.mxu0 0.0
        %1037 = vmatpush1.msra.mxu0 0.0
        %1038 = vmatprep.subr.mxu0 0.0
        %1039 = vmatpush1.msra.mxu0 0.0
        %1040 = vmatprep.subr.mxu0 0.0
        %1041 = vmatpush1.msra.mxu0 0.0
        %1042 = vmatprep.mubr.f32.mxu0 0.0
        %1043 = vmatmul.mubr.f32.gmra.mrb[0].mxu0 %v969
        %v1044 = vpop.f32.mrb[0].mxu0
        %v1045 = vadd.f32 %v965, %v1044
        %v1046 = vpop.f32.mrb[0].mxu0
        %v1047 = vadd.f32 %v965, %v1046
        %1048 = vdwg.mxu0
        %1049 = vmatprep.subr.mxu0 %v434
        %1050 = vmatpush1.msra.mxu0 %v433
        %1051 = vmatprep.subr.mxu0 %v436
        %1052 = vmatpush1.msra.mxu0 %v435
        %1053 = vmatprep.subr.mxu0 %v438
        %1054 = vmatpush1.msra.mxu0 %v437
        %1055 = vmatprep.subr.mxu0 %v440
        %1056 = vmatpush1.msra.mxu0 %v439
        %1057 = vmatprep.subr.mxu0 %v442
        %1058 = vmatpush1.msra.mxu0 %v441
        %1059 = vmatprep.subr.mxu0 %v444
        %1060 = vmatpush1.msra.mxu0 %v443
        %1061 = vmatprep.subr.mxu0 %v446
        %1062 = vmatpush1.msra.mxu0 %v445
        %1063 = vmatprep.subr.mxu0 %v448
        %1064 = vmatpush1.msra.mxu0 %v447
        %1065 = vmatprep.subr.mxu0 %v450
        %1066 = vmatpush1.msra.mxu0 %v449
        %1067 = vmatprep.subr.mxu0 %v452
        %1068 = vmatpush1.msra.mxu0 %v451
        %1069 = vmatprep.subr.mxu0 %v454
        %1070 = vmatpush1.msra.mxu0 %v453
        %1071 = vmatprep.subr.mxu0 %v456
        %1072 = vmatpush1.msra.mxu0 %v455
        %1073 = vmatprep.subr.mxu0 %v458
        %1074 = vmatpush1.msra.mxu0 %v457
        %1075 = vmatprep.subr.mxu0 %v460
        %1076 = vmatpush1.msra.mxu0 %v459
        %1077 = vmatprep.subr.mxu0 %v462
        %1078 = vmatpush1.msra.mxu0 %v461
        %1079 = vmatprep.subr.mxu0 %v464
        %1080 = vmatpush1.msra.mxu0 %v463
        %1081 = vmatprep.subr.mxu0 %v466
        %1082 = vmatpush1.msra.mxu0 %v465
        %1083 = vmatprep.subr.mxu0 %v468
        %1084 = vmatpush1.msra.mxu0 %v467
        %1085 = vmatprep.subr.mxu0 %v470
        %1086 = vmatpush1.msra.mxu0 %v469
        %1087 = vmatprep.subr.mxu0 %v472
        %1088 = vmatpush1.msra.mxu0 %v471
        %1089 = vmatprep.subr.mxu0 %v474
        %1090 = vmatpush1.msra.mxu0 %v473
        %1091 = vmatprep.subr.mxu0 %v476
        %1092 = vmatpush1.msra.mxu0 %v475
        %1093 = vmatprep.subr.mxu0 %v478
        %1094 = vmatpush1.msra.mxu0 %v477
        %1095 = vmatprep.subr.mxu0 %v480
        %1096 = vmatpush1.msra.mxu0 %v479
        %1097 = vmatprep.subr.mxu0 %v482
        %1098 = vmatpush1.msra.mxu0 %v481
        %1099 = vmatprep.subr.mxu0 %v484
        %1100 = vmatpush1.msra.mxu0 %v483
        %1101 = vmatprep.subr.mxu0 %v486
        %1102 = vmatpush1.msra.mxu0 %v485
        %1103 = vmatprep.subr.mxu0 %v488
        %1104 = vmatpush1.msra.mxu0 %v487
        %1105 = vmatprep.subr.mxu0 %v490
        %1106 = vmatpush1.msra.mxu0 %v489
        %1107 = vmatprep.subr.mxu0 %v492
        %1108 = vmatpush1.msra.mxu0 %v491
        %1109 = vmatprep.subr.mxu0 %v494
        %1110 = vmatpush1.msra.mxu0 %v493
        %1111 = vmatprep.subr.mxu0 %v496
        %1112 = vmatpush1.msra.mxu0 %v495
        %1113 = vmatprep.mubr.f32.mxu0 %v1047
        %1114 = vmatmul.mubr.f32.gmra.mrb[0].mxu0 %v1045
        %v1115 = vpop.f32.mrb[0].mxu0
        %v1116 = vadd.f32 0.0, %v1115
        %v1117 = vpop.f32.mrb[0].mxu0
        %v1118 = vadd.f32 0.0, %v1117
        %1119 = vdwg.mxu0
        %v1120 = vsub.f32 %v1045, %v1116
        %v1121 = vsub.f32 %v1047, %v1118
        %v1122 = vmul.f32 %v1120, %v1120
        %v1123 = vmul.f32 %v1121, %v1121
        %1124 = vmatprep.subr.mxu0 %v434
        %1125 = vmatpush1.msra.mxu0 %v433
        %1126 = vmatprep.subr.mxu0 %v436
        %1127 = vmatpush1.msra.mxu0 %v435
        %1128 = vmatprep.subr.mxu0 %v438
        %1129 = vmatpush1.msra.mxu0 %v437
        %1130 = vmatprep.subr.mxu0 %v440
        %1131 = vmatpush1.msra.mxu0 %v439
        %1132 = vmatprep.subr.mxu0 %v442
        %1133 = vmatpush1.msra.mxu0 %v441
        %1134 = vmatprep.subr.mxu0 %v444
        %1135 = vmatpush1.msra.mxu0 %v443
        %1136 = vmatprep.subr.mxu0 %v446
        %1137 = vmatpush1.msra.mxu0 %v445
        %1138 = vmatprep.subr.mxu0 %v448
        %1139 = vmatpush1.msra.mxu0 %v447
        %1140 = vmatprep.subr.mxu0 %v450
        %1141 = vmatpush1.msra.mxu0 %v449
        %1142 = vmatprep.subr.mxu0 %v452
        %1143 = vmatpush1.msra.mxu0 %v451
        %1144 = vmatprep.subr.mxu0 %v454
        %1145 = vmatpush1.msra.mxu0 %v453
        %1146 = vmatprep.subr.mxu0 %v456
        %1147 = vmatpush1.msra.mxu0 %v455
        %1148 = vmatprep.subr.mxu0 %v458
        %1149 = vmatpush1.msra.mxu0 %v457
        %1150 = vmatprep.subr.mxu0 %v460
        %1151 = vmatpush1.msra.mxu0 %v459
        %1152 = vmatprep.subr.mxu0 %v462
        %1153 = vmatpush1.msra.mxu0 %v461
        %1154 = vmatprep.subr.mxu0 %v464
        %1155 = vmatpush1.msra.mxu0 %v463
        %1156 = vmatprep.subr.mxu0 %v466
        %1157 = vmatpush1.msra.mxu0 %v465
        %1158 = vmatprep.subr.mxu0 %v468
        %1159 = vmatpush1.msra.mxu0 %v467
        %1160 = vmatprep.subr.mxu0 %v470
        %1161 = vmatpush1.msra.mxu0 %v469
        %1162 = vmatprep.subr.mxu0 %v472
        %1163 = vmatpush1.msra.mxu0 %v471
        %1164 = vmatprep.subr.mxu0 %v474
        %1165 = vmatpush1.msra.mxu0 %v473
        %1166 = vmatprep.subr.mxu0 %v476
        %1167 = vmatpush1.msra.mxu0 %v475
        %1168 = vmatprep.subr.mxu0 %v478
        %1169 = vmatpush1.msra.mxu0 %v477
        %1170 = vmatprep.subr.mxu0 %v480
        %1171 = vmatpush1.msra.mxu0 %v479
        %1172 = vmatprep.subr.mxu0 %v482
        %1173 = vmatpush1.msra.mxu0 %v481
        %1174 = vmatprep.subr.mxu0 %v484
        %1175 = vmatpush1.msra.mxu0 %v483
        %1176 = vmatprep.subr.mxu0 %v486
        %1177 = vmatpush1.msra.mxu0 %v485
        %1178 = vmatprep.subr.mxu0 %v488
        %1179 = vmatpush1.msra.mxu0 %v487
        %1180 = vmatprep.subr.mxu0 %v490
        %1181 = vmatpush1.msra.mxu0 %v489
        %1182 = vmatprep.subr.mxu0 %v492
        %1183 = vmatpush1.msra.mxu0 %v491
        %1184 = vmatprep.subr.mxu0 %v494
        %1185 = vmatpush1.msra.mxu0 %v493
        %1186 = vmatprep.subr.mxu0 %v496
        %1187 = vmatpush1.msra.mxu0 %v495
        %1188 = vmatprep.mubr.f32.mxu0 %v1123
        %1189 = vmatmul.mubr.f32.gmra.mrb[0].mxu0 %v1122
        %v1190 = vpop.f32.mrb[0].mxu0
        %v1191 = vadd.f32 1e-05, %v1190
        %v1192 = vpop.f32.mrb[0].mxu0
        %v1193 = vadd.f32 1e-05, %v1192
        %1194 = vdwg.mxu0
        %v1195 = vrsqrt.pop %v1191
        %v1196 = vrsqrt.pop %v1193
        %v1197 = vmul.f32 %v1120, %v1195
        %v1198 = vmul.f32 %v1121, %v1196
        %v1199 = vld [vmem:[%s7] sm:$0x3]
        %v1201 = vlaneseq
        %v1202 = vshrl.u32 %v1201, 7
        %v1203 = vsub.s32 0, %v1202
        %v1204 = vrot.slane %v1199, %v1203
        %v1205 = vlaneseq
        %v1206 = vshrl.u32 %v1205, 7
        %v1207 = vsub.s32 1, %v1206
        %v1208 = vrot.slane %v1199, %v1207
        %v1211 = vmul.f32 %v1197, %v1204
        %v1212 = vmul.f32 %v1198, %v1208
        %v1213 = vld [vmem:[%s8] sm:$0x3]
        %v1215 = vlaneseq
        %v1216 = vshrl.u32 %v1215, 7
        %v1217 = vsub.s32 0, %v1216
        %v1218 = vrot.slane %v1213, %v1217
        %v1219 = vlaneseq
        %v1220 = vshrl.u32 %v1219, 7
        %v1221 = vsub.s32 1, %v1220
        %v1222 = vrot.slane %v1213, %v1221
        %v1225 = vadd.f32 %v1211, %v1218
        %v1226 = vadd.f32 %v1212, %v1222
        %v1227 = vmul.f32 %v1225, 0.5
        %v1228 = vmul.f32 %v1226, 0.5
        %v1229 = vmul.f32 %v1225, 0.70710677
        %v1230 = vmul.f32 %v1226, 0.70710677
        %vm1231 = vcmp.ge.f32.partialorder %v1229, 0.0
        %vm1232 = vcmp.ge.f32.partialorder %v1230, 0.0
        %v1233 = vsel %vm1231, 1.0, -1.0
        %v1234 = vsel %vm1232, 1.0, -1.0
        %v1235 = vand.u32 2147483647, %v1229
        %v1236 = vand.u32 2147483647, %v1230
        %v1237 = vmul.f32 %v1235, 0.3275911
        %v1238 = vmul.f32 %v1236, 0.3275911
        %v1239 = vadd.f32 %v1237, 1.0
        %v1240 = vadd.f32 %v1238, 1.0
        %v1241 = vrcp.pop %v1239
        %v1242 = vmul.f32 1.0, %v1241
        %v1243 = vrcp.pop %v1240
        %v1244 = vmul.f32 1.0, %v1243
        %v1245 = vmul.f32 %v1242, 1.0614054
        %v1246 = vmul.f32 %v1244, 1.0614054
        %v1247 = vadd.f32 %v1245, -1.4531521
        %v1248 = vadd.f32 %v1246, -1.4531521
        %v1249 = vmul.f32 %v1247, %v1242
        %v1250 = vmul.f32 %v1248, %v1244
        %v1251 = vadd.f32 %v1249, 1.4214138
        %v1252 = vadd.f32 %v1250, 1.4214138
        %v1253 = vmul.f32 %v1251, %v1242
        %v1254 = vmul.f32 %v1252, %v1244
        %v1255 = vadd.f32 %v1253, -0.28449672
        %v1256 = vadd.f32 %v1254, -0.28449672
        %v1257 = vmul.f32 %v1255, %v1242
        %v1258 = vmul.f32 %v1256, %v1244
        %v1259 = vadd.f32 %v1257, 0.2548296
        %v1260 = vadd.f32 %v1258, 0.2548296
        %v1261 = vmul.f32 %v1259, %v1242
        %v1262 = vmul.f32 %v1260, %v1244
        %v1263 = vsub.f32 0.0, %v1235
        %v1264 = vsub.f32 0.0, %v1236
        %v1265 = vmul.f32 %v1263, %v1235
        %v1266 = vmul.f32 %v1264, %v1236
        %v1267 = vmul.f32 %v1265, 1.442695
        %v1268 = vpow.pop %v1267
        %v1269 = vmul.f32 %v1266, 1.442695
        %v1270 = vpow.pop %v1269
        %v1271 = vmul.f32 %v1261, %v1268
        %v1272 = vmul.f32 %v1262, %v1270
        %v1273 = vsub.f32 1.0, %v1271
        %v1274 = vsub.f32 1.0, %v1272
        %v1275 = vmul.f32 %v1233, %v1273
        %v1276 = vmul.f32 %v1234, %v1274
        %v1277 = vadd.f32 %v1275, 1.0
        %v1278 = vadd.f32 %v1276, 1.0
        %v1279 = vmul.f32 %v1227, %v1277
        %v1280 = vmul.f32 %v1228, %v1278
        %1281 = vrot.lane.b32.xlu0 %v1279, 17
        %v1282 = vpop.permute.xlu0 %1281
        %1283 = vrot.lane.b32.xlu0 %v1280, 17
        %v1284 = vpop.permute.xlu0 %1283
        %v1285 = vsel %vm720, %v1282, %v1284
        %v1286 = vsel %vm720, %v1284, %v1282
        %v1287 = vld [vmem:[#allocation8] ss:$8 sm:$0x3]
        %v1289 = vlaneseq
        %v1290 = vshrl.u32 %v1289, 7
        %v1291 = vsub.s32 0, %v1290
        %v1292 = vrot.slane %v1287, %v1291
        %v1293 = vlaneseq
        %v1294 = vshrl.u32 %v1293, 7
        %v1295 = vsub.s32 1, %v1294
        %v1296 = vrot.slane %v1287, %v1295
        %v1299 = vmul.f32 %v1286, %v1292
        %v1300 = vmul.f32 %v1285, %v1296
        %1301 = vst [vmem:[#allocation2] sm:$0xf] %v1299
        %1302 = vst [vmem:[#allocation2 + $0x8] sm:$0xf] %v1300
        %1303 = vrot.lane.b32.xlu0 %v1279, 16
        %v1304 = vpop.permute.xlu0 %1303
        %1305 = vrot.lane.b32.xlu0 %v1280, 16
        %v1306 = vpop.permute.xlu0 %1305
        %v1307 = vsel %vm743, %v1304, %v1306
        %v1308 = vsel %vm743, %v1306, %v1304
        %v1309 = vld [vmem:[%s746] ss:$8 sm:$0x3]
        %v1311 = vlaneseq
        %v1312 = vshrl.u32 %v1311, 7
        %v1313 = vsub.s32 0, %v1312
        %v1314 = vrot.slane %v1309, %v1313
        %v1315 = vlaneseq
        %v1316 = vshrl.u32 %v1315, 7
        %v1317 = vsub.s32 1, %v1316
        %v1318 = vrot.slane %v1309, %v1317
        %v1321 = vmul.f32 %v1308, %v1314
        %v1322 = vmul.f32 %v1307, %v1318
        %v1325 = vrot.slane %v1321, 4
        %v1326 = vrot.slane %v1322, 4
        %1329 = vst [vmem:[#allocation2] sm:$0xf0] %v1325
        %1330 = vst [vmem:[#allocation2 + $0x8] sm:$0xf0] %v1326
        %1331 = vrot.lane.b32.xlu0 %v1279, 15
        %v1332 = vpop.permute.xlu0 %1331
        %1333 = vrot.lane.b32.xlu0 %v1280, 15
        %v1334 = vpop.permute.xlu0 %1333
        %v1335 = vsel %vm773, %v1332, %v1334
        %v1336 = vsel %vm773, %v1334, %v1332
        %v1337 = vld [vmem:[%s776] ss:$8 sm:$0x3]
        %v1339 = vlaneseq
        %v1340 = vshrl.u32 %v1339, 7
        %v1341 = vsub.s32 0, %v1340
        %v1342 = vrot.slane %v1337, %v1341
        %v1343 = vlaneseq
        %v1344 = vshrl.u32 %v1343, 7
        %v1345 = vsub.s32 1, %v1344
        %v1346 = vrot.slane %v1337, %v1345
        %v1349 = vmul.f32 %v1336, %v1342
        %v1350 = vmul.f32 %v1335, %v1346
        %1351 = vst [vmem:[#allocation2 + $0x10] sm:$0xf] %v1349
        %1352 = vst [vmem:[#allocation2 + $0x18] sm:$0xf] %v1350
        %1353 = vrot.lane.b32.xlu0 %v1279, 1
        %v1354 = vpop.permute.xlu0 %1353
        %1355 = vrot.lane.b32.xlu0 %v1280, 1
        %v1356 = vpop.permute.xlu0 %1355
        %v1357 = vsel %vm797, %v1354, %v1356
        %v1358 = vsel %vm797, %v1356, %v1354
        %v1359 = vld [vmem:[%s800] ss:$8 sm:$0x3]
        %v1361 = vlaneseq
        %v1362 = vshrl.u32 %v1361, 7
        %v1363 = vsub.s32 0, %v1362
        %v1364 = vrot.slane %v1359, %v1363
        %v1365 = vlaneseq
        %v1366 = vshrl.u32 %v1365, 7
        %v1367 = vsub.s32 1, %v1366
        %v1368 = vrot.slane %v1359, %v1367
        %v1371 = vmul.f32 %v1358, %v1364
        %v1372 = vmul.f32 %v1357, %v1368
        %v1375 = vrot.slane %v1371, 4
        %v1376 = vrot.slane %v1372, 4
        %1379 = vst [vmem:[#allocation2 + $0x10] sm:$0xf0] %v1375
        %1380 = vst [vmem:[#allocation2 + $0x18] sm:$0xf0] %v1376
        %v1381 = vld [vmem:[%s823] ss:$8 sm:$0x3]
        %v1383 = vlaneseq
        %v1384 = vshrl.u32 %v1383, 7
        %v1385 = vsub.s32 0, %v1384
        %v1386 = vrot.slane %v1381, %v1385
        %v1387 = vlaneseq
        %v1388 = vshrl.u32 %v1387, 7
        %v1389 = vsub.s32 1, %v1388
        %v1390 = vrot.slane %v1381, %v1389
        %v1393 = vmul.f32 %v1279, %v1386
        %v1394 = vmul.f32 %v1280, %v1390
        %1395 = vst [vmem:[#allocation2 + $0x20] sm:$0xf] %v1393
        %1396 = vst [vmem:[#allocation2 + $0x28] sm:$0xf] %v1394
        %1397 = vrot.lane.b32.xlu0 %v1279, 127
        %v1398 = vpop.permute.xlu0 %1397
        %1399 = vrot.lane.b32.xlu0 %v1280, 127
        %v1400 = vpop.permute.xlu0 %1399
        %v1401 = vsel %vm846, %v1398, %v1400
        %v1402 = vsel %vm846, %v1400, %v1398
        %v1403 = vld [vmem:[%s849] ss:$8 sm:$0x3]
        %v1405 = vlaneseq
        %v1406 = vshrl.u32 %v1405, 7
        %v1407 = vsub.s32 0, %v1406
        %v1408 = vrot.slane %v1403, %v1407
        %v1409 = vlaneseq
        %v1410 = vshrl.u32 %v1409, 7
        %v1411 = vsub.s32 1, %v1410
        %v1412 = vrot.slane %v1403, %v1411
        %v1415 = vmul.f32 %v1401, %v1408
        %v1416 = vmul.f32 %v1402, %v1412
        %v1419 = vrot.slane %v1415, 4
        %v1420 = vrot.slane %v1416, 4
        %1423 = vst [vmem:[#allocation2 + $0x20] sm:$0xf0] %v1419
        %1424 = vst [vmem:[#allocation2 + $0x28] sm:$0xf0] %v1420
        %1425 = vrot.lane.b32.xlu0 %v1279, 113
        %v1426 = vpop.permute.xlu0 %1425
        %1427 = vrot.lane.b32.xlu0 %v1280, 113
        %v1428 = vpop.permute.xlu0 %1427
        %v1429 = vsel %vm876, %v1426, %v1428
        %v1430 = vsel %vm876, %v1428, %v1426
        %v1431 = vld [vmem:[%s879] ss:$8 sm:$0x3]
        %v1433 = vlaneseq
        %v1434 = vshrl.u32 %v1433, 7
        %v1435 = vsub.s32 0, %v1434
        %v1436 = vrot.slane %v1431, %v1435
        %v1437 = vlaneseq
        %v1438 = vshrl.u32 %v1437, 7
        %v1439 = vsub.s32 1, %v1438
        %v1440 = vrot.slane %v1431, %v1439
        %v1443 = vmul.f32 %v1429, %v1436
        %v1444 = vmul.f32 %v1430, %v1440
        %1445 = vst [vmem:[#allocation2 + $0x30] sm:$0xf] %v1443
        %1446 = vst [vmem:[#allocation2 + $0x38] sm:$0xf] %v1444
        %1447 = vrot.lane.b32.xlu0 %v1279, 112
        %v1448 = vpop.permute.xlu0 %1447
        %1449 = vrot.lane.b32.xlu0 %v1280, 112
        %v1450 = vpop.permute.xlu0 %1449
        %v1451 = vsel %vm900, %v1448, %v1450
        %v1452 = vsel %vm900, %v1450, %v1448
        %v1453 = vld [vmem:[%s903] ss:$8 sm:$0x3]
        %v1455 = vlaneseq
        %v1456 = vshrl.u32 %v1455, 7
        %v1457 = vsub.s32 0, %v1456
        %v1458 = vrot.slane %v1453, %v1457
        %v1459 = vlaneseq
        %v1460 = vshrl.u32 %v1459, 7
        %v1461 = vsub.s32 1, %v1460
        %v1462 = vrot.slane %v1453, %v1461
        %v1465 = vmul.f32 %v1451, %v1458
        %v1466 = vmul.f32 %v1452, %v1462
        %v1469 = vrot.slane %v1465, 4
        %v1470 = vrot.slane %v1466, 4
        %1473 = vst [vmem:[#allocation2 + $0x30] sm:$0xf0] %v1469
        %1474 = vst [vmem:[#allocation2 + $0x38] sm:$0xf0] %v1470
        %1475 = vrot.lane.b32.xlu0 %v1279, 111
        %v1476 = vpop.permute.xlu0 %1475
        %1477 = vrot.lane.b32.xlu0 %v1280, 111
        %v1478 = vpop.permute.xlu0 %1477
        %v1479 = vsel %vm930, %v1476, %v1478
        %v1480 = vsel %vm930, %v1478, %v1476
        %v1481 = vld [vmem:[%s933] ss:$8 sm:$0x3]
        %v1483 = vlaneseq
        %v1484 = vshrl.u32 %v1483, 7
        %v1485 = vsub.s32 0, %v1484
        %v1486 = vrot.slane %v1481, %v1485
        %v1487 = vlaneseq
        %v1488 = vshrl.u32 %v1487, 7
        %v1489 = vsub.s32 1, %v1488
        %v1490 = vrot.slane %v1481, %v1489
        %v1493 = vmul.f32 %v1479, %v1486
        %v1494 = vmul.f32 %v1480, %v1490
        %1495 = vst [vmem:[#allocation2 + $0x40] sm:$0xf] %v1493
        %1496 = vst [vmem:[#allocation2 + $0x48] sm:$0xf] %v1494
        %v1497 = vld [vmem:[%s9] sm:$0xf]
        %v1498 = vld [vmem:[#allocation2] sm:$0xff]
        %v1499 = vld [vmem:[#allocation2 + $0x8] sm:$0xff]
        %v1500 = vld [vmem:[#allocation2 + $0x10] sm:$0xff]
        %v1501 = vld [vmem:[#allocation2 + $0x18] sm:$0xff]
        %v1502 = vld [vmem:[#allocation2 + $0x20] sm:$0xff]
        %v1503 = vld [vmem:[#allocation2 + $0x28] sm:$0xff]
        %v1504 = vld [vmem:[#allocation2 + $0x30] sm:$0xff]
        %v1505 = vld [vmem:[#allocation2 + $0x38] sm:$0xff]
        %v1506 = vld [vmem:[#allocation2 + $0x40] sm:$0xf]
        %v1507 = vld [vmem:[#allocation2 + $0x48] sm:$0xf]
        %v1508 = vld [vmem:[%s10] sm:$0xf]
        %1510 = vset.pattern.permute.xlu0 0
        %1511 = vperm.xlu0 %1510, %v1508
        %v1512 = vpop.permute.xlu0 %1511
        %v1515 = vsel %vm967, %v1497, 0
        %v1518 = vsel %vm971, %v1506, 0
        %v1521 = vsel %vm971, %v1507, 0
        %1523 = vmatprep.subr.mxu0 %v1499
        %1524 = vmatpush1.msra.mxu0 %v1498
        %1525 = vmatprep.subr.mxu0 %v1501
        %1526 = vmatpush1.msra.mxu0 %v1500
        %1527 = vmatprep.subr.mxu0 %v1503
        %1528 = vmatpush1.msra.mxu0 %v1502
        %1529 = vmatprep.subr.mxu0 %v1505
        %1530 = vmatpush1.msra.mxu0 %v1504
        %1531 = vmatprep.subr.mxu0 %v1521
        %1532 = vmatpush1.msra.mxu0 %v1518
        %1533 = vmatprep.subr.mxu0 0.0
        %1534 = vmatpush1.msra.mxu0 0.0
        %1535 = vmatprep.subr.mxu0 0.0
        %1536 = vmatpush1.msra.mxu0 0.0
        %1537 = vmatprep.subr.mxu0 0.0
        %1538 = vmatpush1.msra.mxu0 0.0
        %1539 = vmatprep.subr.mxu0 0.0
        %1540 = vmatpush1.msra.mxu0 0.0
        %1541 = vmatprep.subr.mxu0 0.0
        %1542 = vmatpush1.msra.mxu0 0.0
        %1543 = vmatprep.subr.mxu0 0.0
        %1544 = vmatpush1.msra.mxu0 0.0
        %1545 = vmatprep.subr.mxu0 0.0
        %1546 = vmatpush1.msra.mxu0 0.0
        %1547 = vmatprep.subr.mxu0 0.0
        %1548 = vmatpush1.msra.mxu0 0.0
        %1549 = vmatprep.subr.mxu0 0.0
        %1550 = vmatpush1.msra.mxu0 0.0
        %1551 = vmatprep.subr.mxu0 0.0
        %1552 = vmatpush1.msra.mxu0 0.0
        %1553 = vmatprep.subr.mxu0 0.0
        %1554 = vmatpush1.msra.mxu0 0.0
        %1555 = vmatprep.subr.mxu0 0.0
        %1556 = vmatpush1.msra.mxu0 0.0
        %1557 = vmatprep.subr.mxu0 0.0
        %1558 = vmatpush1.msra.mxu0 0.0
        %1559 = vmatprep.subr.mxu0 0.0
        %1560 = vmatpush1.msra.mxu0 0.0
        %1561 = vmatprep.subr.mxu0 0.0
        %1562 = vmatpush1.msra.mxu0 0.0
        %1563 = vmatprep.subr.mxu0 0.0
        %1564 = vmatpush1.msra.mxu0 0.0
        %1565 = vmatprep.subr.mxu0 0.0
        %1566 = vmatpush1.msra.mxu0 0.0
        %1567 = vmatprep.subr.mxu0 0.0
        %1568 = vmatpush1.msra.mxu0 0.0
        %1569 = vmatprep.subr.mxu0 0.0
        %1570 = vmatpush1.msra.mxu0 0.0
        %1571 = vmatprep.subr.mxu0 0.0
        %1572 = vmatpush1.msra.mxu0 0.0
        %1573 = vmatprep.subr.mxu0 0.0
        %1574 = vmatpush1.msra.mxu0 0.0
        %1575 = vmatprep.subr.mxu0 0.0
        %1576 = vmatpush1.msra.mxu0 0.0
        %1577 = vmatprep.subr.mxu0 0.0
        %1578 = vmatpush1.msra.mxu0 0.0
        %1579 = vmatprep.subr.mxu0 0.0
        %1580 = vmatpush1.msra.mxu0 0.0
        %1581 = vmatprep.subr.mxu0 0.0
        %1582 = vmatpush1.msra.mxu0 0.0
        %1583 = vmatprep.subr.mxu0 0.0
        %1584 = vmatpush1.msra.mxu0 0.0
        %1585 = vmatprep.subr.mxu0 0.0
        %1586 = vmatpush1.msra.mxu0 0.0
        %1587 = vmatprep.mubr.f32.mxu0 0.0
        %1588 = vmatmul.mubr.f32.gmra.mrb[0].mxu0 %v1515
        %v1589 = vpop.f32.mrb[0].mxu0
        %v1590 = vadd.f32 %v1512, %v1589
        %v1591 = vpop.f32.mrb[0].mxu0
        %v1592 = vadd.f32 %v1512, %v1591
        %1593 = vdwg.mxu0
        %v1596 = vcombine.low %v1590, %v1592
        %v1598 = vadd.f32 %v432, %v1596
        %1599 = vst [vmem:[%s431] sm:$0xff] %v1598
        %s1600 = sand.u32 %s273, 1
        %s1601 = scalar_lea.sflag [#allocation5], %s1600
        %s1602 = sand.u32 %s273, 1
        %s1603 = smul.addr %s1602, 8
        %s1604 = scalar_lea.vmem [#allocation9], %s1603
        // Predicated region
        $region77: #{tpu_custom_call.1} parent=63 // pred_check
          %p1605 = pneg %p283
        $region78: #{tpu_custom_call.1} parent=63 // pred_check_branch
          %1607 = sbr.rel (%p1605) target = $region80
        $region79: #{tpu_custom_call.1} parent=63 // pred_region
          %s1609 = ssub.s32 128, 128
          %1610 = vsyncadd %s1601, %s1609
          %s1611 = smul.addr %s29, 2
          %s1612 = smul.addr %s1611, 64
          %s1613 = scalar_lea.hbm %s11, %s1612
          %s1615 = sshll.u32 %s1604, 4
          %s1616 = int_to_ptr.vmem [resolvable:$true] %s1615
          %1618 = dma.vmem_to_hbm [thread:$0]  %s1616, 128, %s1613, %s1601
        $region80: #{tpu_custom_call.1} parent=63 // pred_fallthru
          _
      $region64: #{tpu_custom_call.1} parent=5 // pred_fallthru
        _
      %p1619 = scmp.le.s32.totalorder 2, %s24
      // Predicated region
      $region81: #{tpu_custom_call.1} parent=5 // pred_check
        %p1620 = pneg %p1619
      $region82: #{tpu_custom_call.1} parent=5 // pred_check_branch
        %1622 = sbr.rel (%p1620) target = $region84
      $region83: #{tpu_custom_call.1} parent=5 // pred_region
        %s1623 = ssub.s32 %s24, 2
        // Predicated region
        $region85: #{tpu_custom_call.1} parent=83 // pred_check
          %p1624 = pneg %p289
        $region86: #{tpu_custom_call.1} parent=83 // pred_check_branch
          %1626 = sbr.rel (%p1624) target = $region88
        $region87: #{tpu_custom_call.1} parent=83 // pred_region
          %s1627 = sand.u32 %s274, 1
          %s1628 = scalar_lea.sflag [#allocation5], %s1627
          %s1629 = sand.u32 %s274, 1
          %s1630 = smul.addr %s1629, 8
          %s1631 = scalar_lea.vmem [#allocation9], %s1630
          %1632 = dma.done %s1628, 128
        $region88: #{tpu_custom_call.1} parent=83 // pred_fallthru
          _
      $region84: #{tpu_custom_call.1} parent=5 // pred_fallthru
        _
    $region6: #{tpu_custom_call.1} parent=1 // loop_footer
      %s28 = sadd.s32 1, %s24
    $region7: #{tpu_custom_call.1} parent=1 // loop_footer_branch
      %23 = sbr.rel target = $region3
    $region8: #{tpu_custom_call.1} parent=1 // loop_exit
      _
    %1633 = vsyncpa [#allocation4], 1
    %s1634 = scalar_lea.sflag [#allocation4], 1
    %1635 = vsyncpa %s1634, 1
    %1636 = vsyncpa [#allocation7], 1
    %1637 = vsyncpa [#allocation5], 1
    %s1638 = scalar_lea.sflag [#allocation5], 1
    %1639 = vsyncpa %s1638, 1

</llo_original>
